<compile_context>
chip_gen: v7x
topology: tpu7x:2x2x1
jax: 0.10.0
libtpu: 0.0.40
codegen_flags: <defaults>
</compile_context>

<pallas_src>
import jax
import jax.numpy as jnp
from jax.experimental import pallas as pl
from jax.experimental.pallas import tpu as pltpu


def hgcn_gu_kernel(h_ref, user_in_ref, group_in_ref, w1t_ref, w2t_ref, b_ref,
                   user_out_ref, group_out_ref,
                   user_cur_ref, user_acc_ref, group_cur_ref):
    # h_ref:        (TILE_G, U)   bf16 streamed tile of the hypergraph
    # user_in_ref:  (U, Dp)       resident
    # group_in_ref: (Gp, Dp)      resident
    # w1t_ref:      (1, Dp, Dp)   per-layer W1.T
    # w2t_ref:      (1, Dp, Dp)   per-layer W2.T
    # b_ref:        (1, 1, Dp)    per-layer bias
    # user_out_ref: (U, Dp)       layer-sum accumulator (resident output)
    # group_out_ref:(Gp, Dp)      layer-sum accumulator (resident output)
    # scratch: user_cur (U,Dp), user_acc (U,Dp), group_cur (Gp,Dp)
    l = pl.program_id(0)
    g = pl.program_id(1)
    last_l = pl.num_programs(0) - 1
    last_g = pl.num_programs(1) - 1
    tile_g = h_ref.shape[0]

    @pl.when((l == 0) & (g == 0))
    def _init():
        u0 = user_in_ref[...]
        g0 = group_in_ref[...]
        user_cur_ref[...] = u0
        user_out_ref[...] = u0
        group_cur_ref[...] = g0
        group_out_ref[...] = g0

    @pl.when((l > 0) & (g == 0))
    def _advance_layer():
        # previous layer's new_user is fully accumulated -> becomes this
        # layer's user input and is added to the layer sum.
        nu = user_acc_ref[...]
        user_cur_ref[...] = nu
        user_out_ref[...] = user_out_ref[...] + nu

    @pl.when(g == 0)
    def _reset_acc():
        user_acc_ref[...] = jnp.zeros_like(user_acc_ref)

    # Per-layer weights/bias (tiny) -- loaded once per grid step.
    w1t = w1t_ref[0]                       # (Dp, Dp)
    w2t = w2t_ref[0]                       # (Dp, Dp)
    b = b_ref[0]                           # (1, Dp)

    h = h_ref[...].astype(jnp.float32)     # (TILE_G, U); bf16 0/1 is exact
    user = user_cur_ref[...]               # (U, Dp)

    # node_msg = H_tile @ user
    node_msg = jnp.dot(h, user, preferred_element_type=jnp.float32)   # (TILE_G, Dp)

    row0 = pl.multiple_of(g * tile_g, tile_g)
    grp_prev = group_cur_ref[pl.ds(row0, tile_g), :]                  # (TILE_G, Dp)
    edge = node_msg * grp_prev
    msg = (jnp.dot(node_msg, w1t, preferred_element_type=jnp.float32)
           + jnp.dot(edge, w2t, preferred_element_type=jnp.float32)
           + b)                                                       # (TILE_G, Dp)

    # group state / layer-sum for this tile
    group_cur_ref[pl.ds(row0, tile_g), :] = msg
    group_out_ref[pl.ds(row0, tile_g), :] = (
        group_out_ref[pl.ds(row0, tile_g), :] + msg)

    # new_user += H_tile.T @ msg, without materializing H.T:
    # contract the G-tile axis of both operands.
    user_acc_ref[...] = user_acc_ref[...] + jax.lax.dot_general(
        h, msg,
        dimension_numbers=(((0,), (0,)), ((), ())),
        preferred_element_type=jnp.float32)

    @pl.when((l == last_l) & (g == last_g))
    def _finalize():
        user_out_ref[...] = user_out_ref[...] + user_acc_ref[...]


def hgcn_gu_forward(hyper_graph, group_emb, user_emb, w_stack, b_stack,
                    *, tile_g=None):
    """Pallas HGCN_GU forward.

    hyper_graph : (G, U) float 0/1 dense incidence matrix
    group_emb   : (G, D)
    user_emb    : (U, D)
    w_stack     : (L, D, 2D)  per-layer nn.Linear(2D, D).weight
    b_stack     : (L, D)      per-layer nn.Linear(2D, D).bias
    returns (final_node_emb (U, D), final_edge_emb (G, D))
    """
    L, D, twoD = w_stack.shape
    assert twoD == 2 * D
    G, U = hyper_graph.shape
    assert user_emb.shape == (U, D) and group_emb.shape == (G, D)
    f32 = jnp.float32

    # Lane-dense embedding dim.
    Dp = ((D + 127) // 128) * 128

    # G-tile budget: keep double-buffered bf16 H tiles ~<= 8 MiB so the kernel
    # fits comfortably under v7x's 64 MiB VMEM as well as v5e/v6e.
    if tile_g is None:
        t = (8 * 1024 * 1024) // (2 * max(U, 1) * 2)
        t = max(128, min((int(t) // 128) * 128, 1024))
        tile_g = min(t, ((G + 127) // 128) * 128)
    Gp = ((G + tile_g - 1) // tile_g) * tile_g
    num_g = Gp // tile_g

    # Split W = [W1 | W2], pre-transpose, zero-pad to (Dp, Dp).
    w1t = jnp.transpose(w_stack[:, :, :D], (0, 2, 1)).astype(f32)
    w2t = jnp.transpose(w_stack[:, :, D:], (0, 2, 1)).astype(f32)
    w1t = jnp.zeros((L, Dp, Dp), f32).at[:, :D, :D].set(w1t)
    w2t = jnp.zeros((L, Dp, Dp), f32).at[:, :D, :D].set(w2t)
    b = jnp.zeros((L, 1, Dp), f32).at[:, 0, :D].set(b_stack.astype(f32))

    # Zero-pad G rows (zero H rows contribute nothing to the user update and
    # the padded group rows are sliced off below).  H -> bf16 (exact for 0/1).
    h_bf16 = jnp.zeros((Gp, U), jnp.bfloat16).at[:G, :].set(
        hyper_graph.astype(jnp.bfloat16))
    user_p = jnp.zeros((U, Dp), f32).at[:, :D].set(user_emb.astype(f32))
    group_p = jnp.zeros((Gp, Dp), f32).at[:G, :D].set(group_emb.astype(f32))

    # VMEM budget (double-buffered streamed inputs + resident state).
    vmem_est = (
        2 * tile_g * U * 2          # bf16 H tile, double buffered
        + tile_g * U * 4            # in-kernel f32 copy of the tile
        + 2 * U * Dp * 4            # user_in
        + 2 * Gp * Dp * 4           # group_in
        + 2 * 2 * Dp * Dp * 4 * 2   # w1t + w2t
        + 2 * (U * Dp + Gp * Dp) * 4  # outputs
        + (2 * U * Dp + Gp * Dp) * 4  # scratch
    )
    vmem_limit = int(min(max(vmem_est * 5 // 4 + (2 << 20), 16 << 20), 64 << 20))

    flops = int(L * (4 * Gp * U * Dp + 4 * Gp * Dp * Dp))
    bytes_accessed = int(L * Gp * U * 2
                         + 2 * (U * Dp + Gp * Dp) * 4
                         + L * (2 * Dp * Dp + Dp) * 4)

    out_user, out_group = pl.pallas_call(
        hgcn_gu_kernel,
        out_shape=(jax.ShapeDtypeStruct((U, Dp), f32),
                   jax.ShapeDtypeStruct((Gp, Dp), f32)),
        grid_spec=pltpu.PrefetchScalarGridSpec(
            num_scalar_prefetch=0,
            grid=(L, num_g),
            in_specs=[
                pl.BlockSpec((tile_g, U), lambda l, g: (g, 0)),     # H stream
                pl.BlockSpec((U, Dp), lambda l, g: (0, 0)),         # user_emb
                pl.BlockSpec((Gp, Dp), lambda l, g: (0, 0)),        # group_emb
                pl.BlockSpec((1, Dp, Dp), lambda l, g: (l, 0, 0)),  # W1.T
                pl.BlockSpec((1, Dp, Dp), lambda l, g: (l, 0, 0)),  # W2.T
                pl.BlockSpec((1, 1, Dp), lambda l, g: (l, 0, 0)),   # bias
            ],
            out_specs=[
                pl.BlockSpec((U, Dp), lambda l, g: (0, 0)),
                pl.BlockSpec((Gp, Dp), lambda l, g: (0, 0)),
            ],
            scratch_shapes=[
                pltpu.VMEM((U, Dp), f32),    # user_cur
                pltpu.VMEM((U, Dp), f32),    # user_acc (new_user accumulator)
                pltpu.VMEM((Gp, Dp), f32),   # group_cur
            ],
        ),
        compiler_params=pltpu.CompilerParams(
            # both axes carry state / accumulation -> must be "arbitrary"
            dimension_semantics=("arbitrary", "arbitrary"),
            vmem_limit_bytes=vmem_limit,
        ),
        cost_estimate=pl.CostEstimate(
            flops=flops, transcendentals=0, bytes_accessed=bytes_accessed),
    )(h_bf16, user_p, group_p, w1t, w2t, b)

    return out_user[:, :D], out_group[:G, :D]


def hgcn_gu_reference(hyper_graph, group_emb, user_emb, w_stack, b_stack):
    """Pure-JAX f32 reference mirroring the PyTorch forward."""
    user, group = user_emb, group_emb
    final_node = [user]
    final_edge = [group]
    L = w_stack.shape[0]
    for i in range(L):
        node_msg = hyper_graph @ user
        edge = node_msg * group
        cat = jnp.concatenate([node_msg, edge], axis=1)
        msg = cat @ w_stack[i].T + b_stack[i]
        new_user = hyper_graph.T @ msg
        user, group = new_user, msg
        final_node.append(user)
        final_edge.append(group)
    return (jnp.sum(jnp.stack(final_node), axis=0),
            jnp.sum(jnp.stack(final_edge), axis=0))


if __name__ == "__main__":
    key = jax.random.PRNGKey(0)
    # groups, users, embedding dim, layers (small but exercises G/D padding
    # and the multi-G-tile streaming + cross-tile user accumulation).
    G, U, D, L = 200, 160, 96, 2

    k_h, k_u, k_g, k_w, k_b = jax.random.split(key, 5)

    hyper_graph = (jax.random.uniform(k_h, (G, U)) < 0.3).astype(jnp.float32)
    user_emb = jax.random.normal(k_u, (U, D), dtype=jnp.float32) * 0.1
    group_emb = jax.random.normal(k_g, (G, D), dtype=jnp.float32) * 0.1

    bound = 1.0 / jnp.sqrt(2.0 * D)
    w_stack = jax.random.uniform(k_w, (L, D, 2 * D), minval=-bound, maxval=bound,
                                 dtype=jnp.float32)
    b_stack = jax.random.uniform(k_b, (L, D), minval=-bound, maxval=bound,
                                 dtype=jnp.float32)

    # tile_g=128 forces 2 G tiles so the streamed/accumulated path is exercised.
    node_out, edge_out = hgcn_gu_forward(hyper_graph, group_emb, user_emb,
                                         w_stack, b_stack, tile_g=128)
    jax.block_until_ready((node_out, edge_out))

    ref_node, ref_edge = hgcn_gu_reference(hyper_graph, group_emb, user_emb,
                                           w_stack, b_stack)
    assert node_out.shape == ref_node.shape and edge_out.shape == ref_edge.shape
    assert jnp.allclose(node_out, ref_node, atol=1e-3, rtol=1e-3), (
        float(jnp.max(jnp.abs(node_out - ref_node))))
    assert jnp.allclose(edge_out, ref_edge, atol=1e-3, rtol=1e-3), (
        float(jnp.max(jnp.abs(edge_out - ref_edge))))

    print("KERNEL_OK")
</pallas_src>

<mosaic_0001>
module attributes {stable_mosaic.version = 11 : i64} {
  func.func @hgcn_gu_kernel(%arg0: i32, %arg1: i32, %arg2: memref<128x160xbf16, #tpu.memory_space<vmem>>, %arg3: memref<160x128xf32, #tpu.memory_space<vmem>>, %arg4: memref<256x128xf32, #tpu.memory_space<vmem>>, %arg5: memref<1x128x128xf32, #tpu.memory_space<vmem>>, %arg6: memref<1x128x128xf32, #tpu.memory_space<vmem>>, %arg7: memref<1x1x128xf32, #tpu.memory_space<vmem>>, %arg8: memref<160x128xf32, #tpu.memory_space<vmem>>, %arg9: memref<256x128xf32, #tpu.memory_space<vmem>>, %arg10: memref<160x128xf32, #tpu.memory_space<vmem>>, %arg11: memref<160x128xf32, #tpu.memory_space<vmem>>, %arg12: memref<256x128xf32, #tpu.memory_space<vmem>>) attributes {dimension_semantics = [#tpu.dimension_semantics<arbitrary>, #tpu.dimension_semantics<arbitrary>], iteration_bounds = array<i64: 2, 2>, scalar_prefetch = 0 : i64, scratch_operands = 3 : i64, tpu.core_type = #tpu.core_type<tc>, window_params = [{transform_indices = @transform_0, window_bounds = array<i64: 128, 160>}, {pipeline_mode = #tpu.pipeline_mode<synchronous>, transform_indices = @transform_1, window_bounds = array<i64: 160, 128>}, {pipeline_mode = #tpu.pipeline_mode<synchronous>, transform_indices = @transform_2, window_bounds = array<i64: 256, 128>}, {transform_indices = @transform_3, window_bounds = array<i64: 1, 128, 128>}, {transform_indices = @transform_4, window_bounds = array<i64: 1, 128, 128>}, {transform_indices = @transform_5, window_bounds = array<i64: 1, 1, 128>}, {pipeline_mode = #tpu.pipeline_mode<synchronous>, transform_indices = @transform_6, window_bounds = array<i64: 160, 128>}, {pipeline_mode = #tpu.pipeline_mode<synchronous>, transform_indices = @transform_7, window_bounds = array<i64: 256, 128>}]} {
    %c0_i32 = arith.constant 0 : i32
    %0 = arith.cmpi eq, %arg0, %c0_i32 : i32
    %c0_i32_0 = arith.constant 0 : i32
    %1 = arith.cmpi eq, %arg1, %c0_i32_0 : i32
    %2 = arith.andi %0, %1 : i1
    %3 = arith.extui %2 : i1 to i32
    %c0_i32_1 = arith.constant 0 : i32
    %4 = arith.cmpi ne, %3, %c0_i32_1 : i32
    scf.if %4 {
      %c0_32 = arith.constant 0 : index
      %c0_33 = arith.constant 0 : index
      %49 = vector.load %arg3[%c0_32, %c0_33] : memref<160x128xf32, #tpu.memory_space<vmem>>, vector<160x128xf32>
      %c0_34 = arith.constant 0 : index
      %c0_35 = arith.constant 0 : index
      %50 = vector.load %arg4[%c0_34, %c0_35] : memref<256x128xf32, #tpu.memory_space<vmem>>, vector<256x128xf32>
      %c0_36 = arith.constant 0 : index
      %c0_37 = arith.constant 0 : index
      %51 = vector.load %arg10[%c0_36, %c0_37] : memref<160x128xf32, #tpu.memory_space<vmem>>, vector<160x128xf32>
      tpu.vector_store %arg10[%c0_36, %c0_37], %49 {strides = array<i32>} : memref<160x128xf32, #tpu.memory_space<vmem>>, vector<160x128xf32>,
      %c0_38 = arith.constant 0 : index
      %c0_39 = arith.constant 0 : index
      %52 = vector.load %arg8[%c0_38, %c0_39] : memref<160x128xf32, #tpu.memory_space<vmem>>, vector<160x128xf32>
      tpu.vector_store %arg8[%c0_38, %c0_39], %49 {strides = array<i32>} : memref<160x128xf32, #tpu.memory_space<vmem>>, vector<160x128xf32>,
      %c0_40 = arith.constant 0 : index
      %c0_41 = arith.constant 0 : index
      %53 = vector.load %arg12[%c0_40, %c0_41] : memref<256x128xf32, #tpu.memory_space<vmem>>, vector<256x128xf32>
      tpu.vector_store %arg12[%c0_40, %c0_41], %50 {strides = array<i32>} : memref<256x128xf32, #tpu.memory_space<vmem>>, vector<256x128xf32>,
      %c0_42 = arith.constant 0 : index
      %c0_43 = arith.constant 0 : index
      %54 = vector.load %arg9[%c0_42, %c0_43] : memref<256x128xf32, #tpu.memory_space<vmem>>, vector<256x128xf32>
      tpu.vector_store %arg9[%c0_42, %c0_43], %50 {strides = array<i32>} : memref<256x128xf32, #tpu.memory_space<vmem>>, vector<256x128xf32>,
    } else {
    }
    %c0_i32_2 = arith.constant 0 : i32
    %5 = arith.cmpi sgt, %arg0, %c0_i32_2 : i32
    %c0_i32_3 = arith.constant 0 : i32
    %6 = arith.cmpi eq, %arg1, %c0_i32_3 : i32
    %7 = arith.andi %5, %6 : i1
    %8 = arith.extui %7 : i1 to i32
    %c0_i32_4 = arith.constant 0 : i32
    %9 = arith.cmpi ne, %8, %c0_i32_4 : i32
    scf.if %9 {
      %c0_32 = arith.constant 0 : index
      %c0_33 = arith.constant 0 : index
      %49 = vector.load %arg11[%c0_32, %c0_33] : memref<160x128xf32, #tpu.memory_space<vmem>>, vector<160x128xf32>
      %c0_34 = arith.constant 0 : index
      %c0_35 = arith.constant 0 : index
      %50 = vector.load %arg10[%c0_34, %c0_35] : memref<160x128xf32, #tpu.memory_space<vmem>>, vector<160x128xf32>
      tpu.vector_store %arg10[%c0_34, %c0_35], %49 {strides = array<i32>} : memref<160x128xf32, #tpu.memory_space<vmem>>, vector<160x128xf32>,
      %c0_36 = arith.constant 0 : index
      %c0_37 = arith.constant 0 : index
      %51 = vector.load %arg8[%c0_36, %c0_37] : memref<160x128xf32, #tpu.memory_space<vmem>>, vector<160x128xf32>
      %52 = arith.addf %51, %49 : vector<160x128xf32>
      %c0_38 = arith.constant 0 : index
      %c0_39 = arith.constant 0 : index
      %53 = vector.load %arg8[%c0_38, %c0_39] : memref<160x128xf32, #tpu.memory_space<vmem>>, vector<160x128xf32>
      tpu.vector_store %arg8[%c0_38, %c0_39], %52 {strides = array<i32>} : memref<160x128xf32, #tpu.memory_space<vmem>>, vector<160x128xf32>,
    } else {
    }
    %c0_i32_5 = arith.constant 0 : i32
    %10 = arith.cmpi eq, %arg1, %c0_i32_5 : i32
    %11 = arith.extui %10 : i1 to i32
    %c0_i32_6 = arith.constant 0 : i32
    %12 = arith.cmpi ne, %11, %c0_i32_6 : i32
    scf.if %12 {
      %cst_32 = arith.constant 0.000000e+00 : f32
      %49 = vector.broadcast %cst_32 : f32 to vector<160x128xf32>
      %c0_33 = arith.constant 0 : index
      %c0_34 = arith.constant 0 : index
      %50 = vector.load %arg11[%c0_33, %c0_34] : memref<160x128xf32, #tpu.memory_space<vmem>>, vector<160x128xf32>
      tpu.vector_store %arg11[%c0_33, %c0_34], %49 {strides = array<i32>} : memref<160x128xf32, #tpu.memory_space<vmem>>, vector<160x128xf32>,
    } else {
    }
    %c0 = arith.constant 0 : index
    %c0_7 = arith.constant 0 : index
    %c0_8 = arith.constant 0 : index
    %13 = vector.load %arg5[%c0, %c0_7, %c0_8] : memref<1x128x128xf32, #tpu.memory_space<vmem>>, vector<1x128x128xf32>
    %14 = vector.shape_cast %13 : vector<1x128x128xf32> to vector<128x128xf32>
    %c0_9 = arith.constant 0 : index
    %c0_10 = arith.constant 0 : index
    %c0_11 = arith.constant 0 : index
    %15 = vector.load %arg6[%c0_9, %c0_10, %c0_11] : memref<1x128x128xf32, #tpu.memory_space<vmem>>, vector<1x128x128xf32>
    %16 = vector.shape_cast %15 : vector<1x128x128xf32> to vector<128x128xf32>
    %c0_12 = arith.constant 0 : index
    %c0_13 = arith.constant 0 : index
    %c0_14 = arith.constant 0 : index
    %17 = vector.load %arg7[%c0_12, %c0_13, %c0_14] : memref<1x1x128xf32, #tpu.memory_space<vmem>>, vector<1x1x128xf32>
    %18 = vector.shape_cast %17 : vector<1x1x128xf32> to vector<1x128xf32>
    %c0_15 = arith.constant 0 : index
    %c0_16 = arith.constant 0 : index
    %19 = vector.load %arg2[%c0_15, %c0_16] : memref<128x160xbf16, #tpu.memory_space<vmem>>, vector<128x160xbf16>
    %20 = arith.extf %19 : vector<128x160xbf16> to vector<128x160xf32>
    %c0_17 = arith.constant 0 : index
    %c0_18 = arith.constant 0 : index
    %21 = vector.load %arg10[%c0_17, %c0_18] : memref<160x128xf32, #tpu.memory_space<vmem>>, vector<160x128xf32>
    %cst = arith.constant dense<0.000000e+00> : vector<128x128xf32>
    %22 = tpu.matmul %20, %21, %cst {dimension_numbers = #tpu.dot_dimension_numbers<[1], [0], [0], [1], [0, 0, 1, 1], [], []>} : vector<128x160xf32>, vector<160x128xf32>, vector<128x128xf32> -> vector<128x128xf32>
    %c128_i32 = arith.constant 128 : i32
    %23 = arith.muli %arg1, %c128_i32 : i32
    %24 = tpu.assume_multiple %23, 128 : i32
    %25 = arith.index_cast %24 : i32 to index
    %c0_19 = arith.constant 0 : index
    %26 = vector.load %arg12[%25, %c0_19] : memref<256x128xf32, #tpu.memory_space<vmem>>, vector<128x128xf32>
    %27 = arith.mulf %22, %26 : vector<128x128xf32>
    %cst_20 = arith.constant dense<0.000000e+00> : vector<128x128xf32>
    %28 = tpu.matmul %22, %14, %cst_20 {dimension_numbers = #tpu.dot_dimension_numbers<[1], [0], [0], [1], [0, 0, 1, 1], [], []>} : vector<128x128xf32>, vector<128x128xf32>, vector<128x128xf32> -> vector<128x128xf32>
    %cst_21 = arith.constant dense<0.000000e+00> : vector<128x128xf32>
    %29 = tpu.matmul %27, %16, %cst_21 {dimension_numbers = #tpu.dot_dimension_numbers<[1], [0], [0], [1], [0, 0, 1, 1], [], []>} : vector<128x128xf32>, vector<128x128xf32>, vector<128x128xf32> -> vector<128x128xf32>
    %30 = arith.addf %28, %29 : vector<128x128xf32>
    %31 = vector.broadcast %18 : vector<1x128xf32> to vector<128x128xf32>
    %32 = arith.addf %30, %31 : vector<128x128xf32>
    %33 = arith.index_cast %24 : i32 to index
    %c0_22 = arith.constant 0 : index
    %34 = vector.load %arg12[%33, %c0_22] : memref<256x128xf32, #tpu.memory_space<vmem>>, vector<128x128xf32>
    tpu.vector_store %arg12[%33, %c0_22], %32 {strides = array<i32>} : memref<256x128xf32, #tpu.memory_space<vmem>>, vector<128x128xf32>,
    %35 = arith.index_cast %24 : i32 to index
    %c0_23 = arith.constant 0 : index
    %36 = vector.load %arg9[%35, %c0_23] : memref<256x128xf32, #tpu.memory_space<vmem>>, vector<128x128xf32>
    %37 = arith.addf %36, %32 : vector<128x128xf32>
    %38 = arith.index_cast %24 : i32 to index
    %c0_24 = arith.constant 0 : index
    %39 = vector.load %arg9[%38, %c0_24] : memref<256x128xf32, #tpu.memory_space<vmem>>, vector<128x128xf32>
    tpu.vector_store %arg9[%38, %c0_24], %37 {strides = array<i32>} : memref<256x128xf32, #tpu.memory_space<vmem>>, vector<128x128xf32>,
    %c0_25 = arith.constant 0 : index
    %c0_26 = arith.constant 0 : index
    %40 = vector.load %arg11[%c0_25, %c0_26] : memref<160x128xf32, #tpu.memory_space<vmem>>, vector<160x128xf32>
    %cst_27 = arith.constant dense<0.000000e+00> : vector<160x128xf32>
    %41 = tpu.matmul %20, %32, %cst_27 {dimension_numbers = #tpu.dot_dimension_numbers<[0], [0], [1], [1], [0, 1, 1, 1], [], []>} : vector<128x160xf32>, vector<128x128xf32>, vector<160x128xf32> -> vector<160x128xf32>
    %42 = arith.addf %40, %41 : vector<160x128xf32>
    %c0_28 = arith.constant 0 : index
    %c0_29 = arith.constant 0 : index
    %43 = vector.load %arg11[%c0_28, %c0_29] : memref<160x128xf32, #tpu.memory_space<vmem>>, vector<160x128xf32>
    tpu.vector_store %arg11[%c0_28, %c0_29], %42 {strides = array<i32>} : memref<160x128xf32, #tpu.memory_space<vmem>>, vector<160x128xf32>,
    %c1_i32 = arith.constant 1 : i32
    %44 = arith.cmpi eq, %arg0, %c1_i32 : i32
    %c1_i32_30 = arith.constant 1 : i32
    %45 = arith.cmpi eq, %arg1, %c1_i32_30 : i32
    %46 = arith.andi %44, %45 : i1
    %47 = arith.extui %46 : i1 to i32
    %c0_i32_31 = arith.constant 0 : i32
    %48 = arith.cmpi ne, %47, %c0_i32_31 : i32
    scf.if %48 {
      %c0_32 = arith.constant 0 : index
      %c0_33 = arith.constant 0 : index
      %49 = vector.load %arg8[%c0_32, %c0_33] : memref<160x128xf32, #tpu.memory_space<vmem>>, vector<160x128xf32>
      %c0_34 = arith.constant 0 : index
      %c0_35 = arith.constant 0 : index
      %50 = vector.load %arg11[%c0_34, %c0_35] : memref<160x128xf32, #tpu.memory_space<vmem>>, vector<160x128xf32>
      %51 = arith.addf %49, %50 : vector<160x128xf32>
      %c0_36 = arith.constant 0 : index
      %c0_37 = arith.constant 0 : index
      %52 = vector.load %arg8[%c0_36, %c0_37] : memref<160x128xf32, #tpu.memory_space<vmem>>, vector<160x128xf32>
      tpu.vector_store %arg8[%c0_36, %c0_37], %51 {strides = array<i32>} : memref<160x128xf32, #tpu.memory_space<vmem>>, vector<160x128xf32>,
    } else {
    }
    return
  }
  func.func @transform_0(%arg0: i32, %arg1: i32) -> (i32, i32) {
    %c0_i32 = arith.constant 0 : i32
    %c0_i32_0 = arith.constant 0 : i32
    return %arg1, %c0_i32 : i32, i32
  }
  func.func @transform_1(%arg0: i32, %arg1: i32) -> (i32, i32) {
    %c0_i32 = arith.constant 0 : i32
    %c0_i32_0 = arith.constant 0 : i32
    %c0_i32_1 = arith.constant 0 : i32
    return %c0_i32, %c0_i32_0 : i32, i32
  }
  func.func @transform_2(%arg0: i32, %arg1: i32) -> (i32, i32) {
    %c0_i32 = arith.constant 0 : i32
    %c0_i32_0 = arith.constant 0 : i32
    %c0_i32_1 = arith.constant 0 : i32
    return %c0_i32, %c0_i32_0 : i32, i32
  }
  func.func @transform_3(%arg0: i32, %arg1: i32) -> (i32, i32, i32) {
    %c0_i32 = arith.constant 0 : i32
    %c0_i32_0 = arith.constant 0 : i32
    %c0_i32_1 = arith.constant 0 : i32
    return %arg0, %c0_i32, %c0_i32_0 : i32, i32, i32
  }
  func.func @transform_4(%arg0: i32, %arg1: i32) -> (i32, i32, i32) {
    %c0_i32 = arith.constant 0 : i32
    %c0_i32_0 = arith.constant 0 : i32
    %c0_i32_1 = arith.constant 0 : i32
    return %arg0, %c0_i32, %c0_i32_0 : i32, i32, i32
  }
  func.func @transform_5(%arg0: i32, %arg1: i32) -> (i32, i32, i32) {
    %c0_i32 = arith.constant 0 : i32
    %c0_i32_0 = arith.constant 0 : i32
    %c0_i32_1 = arith.constant 0 : i32
    return %arg0, %c0_i32, %c0_i32_0 : i32, i32, i32
  }
  func.func @transform_6(%arg0: i32, %arg1: i32) -> (i32, i32) {
    %c0_i32 = arith.constant 0 : i32
    %c0_i32_0 = arith.constant 0 : i32
    %c0_i32_1 = arith.constant 0 : i32
    return %c0_i32, %c0_i32_0 : i32, i32
  }
  func.func @transform_7(%arg0: i32, %arg1: i32) -> (i32, i32) {
    %c0_i32 = arith.constant 0 : i32
    %c0_i32_0 = arith.constant 0 : i32
    %c0_i32_1 = arith.constant 0 : i32
    return %c0_i32, %c0_i32_0 : i32, i32
  }
}

</mosaic_0001>

<llo_original>
// kernel: tpu_custom_call.1
$region0: #{tpu_custom_call.1}
  #allocation0 [shape = 'u32[]', space=smem, size = 0x4, offset = 0x4, fixed_abs, tag = 'smem constant byte address 0x4 - core index']
  #allocation1 [shape = 'u32[144,128]{1,0:T(1,128)}', space=vmem, size = 0x12000, scoped, tag = 'internal scratch']
  #allocation2 [shape = 'f32[160,128]{1,0:T(8,128)}', space=vmem, size = 0x14000, scoped, tag = 'scratch operand']
  #allocation3 [shape = 'f32[160,128]{1,0:T(8,128)}', space=vmem, size = 0x14000, scoped, tag = 'scratch operand']
  #allocation4 [shape = 'f32[256,128]{1,0:T(8,128)}', space=vmem, size = 0x20000, scoped, tag = 'scratch operand']
  %s0 = inlined_call_operand.vmem [shape: bf16[256,160], index: 0, kind: input, shape index: {}]
  %s1 = inlined_call_operand.vmem [shape: f32[160,128], index: 1, kind: input, shape index: {}]
  %s2 = inlined_call_operand.vmem [shape: f32[256,128], index: 2, kind: input, shape index: {}]
  %s3 = inlined_call_operand.hbm [shape: f32[2,128,128], index: 3, kind: input, shape index: {}]
  %s4 = inlined_call_operand.hbm [shape: f32[2,128,128], index: 4, kind: input, shape index: {}]
  %s5 = inlined_call_operand.vmem [shape: f32[2,1,128], index: 5, kind: input, shape index: {}]
  %s6 = inlined_call_operand.hbm [shape: f32[160,128], index: 6, kind: output, shape index: {0}]
  %s7 = inlined_call_operand.hbm [shape: f32[256,128], index: 7, kind: output, shape index: {1}]
  %8 = xla_tuple %s6, %s7
  %s9 = sld [smem:[#allocation0]]
  $region89: #{tpu_custom_call.1} parent=0
    _
  %s11 = ssub.s32 1, %s9
  %s12 = scalar_select 0, %s11, %s9
  $region1: #{tpu_custom_call.1} parent=0
    #allocation5 [shape = 'u8[131072]{0}', space=vmem, size = 0x20000, scoped, tag = 'input window, operand 3']
    #allocation6 [shape = 's32[2]{0}', space=sflag, size = 0x8, scoped, tag = 'scoped memory for tpu_custom_call.1']
    #allocation7 [shape = 's32[2]{0}', space=sflag, size = 0x8, scoped, tag = 'scoped memory for tpu_custom_call.1']
    #allocation8 [shape = 'u8[131072]{0}', space=vmem, size = 0x20000, scoped, tag = 'input window, operand 4']
    #allocation9 [shape = 's32[2]{0}', space=sflag, size = 0x8, scoped, tag = 'scoped memory for tpu_custom_call.1']
    #allocation10 [shape = 'u8[81920]{0}', space=vmem, size = 0x14000, scoped, tag = 'output window, operand 0, single buffered']
    #allocation11 [shape = 'u8[131072]{0}', space=vmem, size = 0x20000, scoped, tag = 'output window, operand 1, single buffered']
    #allocation12 [shape = 's32[1]{0}', space=sflag, size = 0x4, scoped, tag = 'scoped memory for tpu_custom_call.1']
    %13 = vsyncpa [#allocation6], 0
    %s14 = scalar_lea.sflag [#allocation6], 1
    %15 = vsyncpa %s14, 0
    %16 = vsyncpa [#allocation9], 0
    %s17 = scalar_lea.sflag [#allocation9], 1
    %18 = vsyncpa %s17, 0
    %19 = vsyncpa [#allocation7], 0
    %20 = vsyncpa [#allocation12], 0
    loop: start=0, step=1, limit=6
    $region2: #{tpu_custom_call.1} parent=1 // loop_pre_header
      _
    $region3: #{tpu_custom_call.1} parent=1 // loop_header
      %s22 = sphi 0, %s26
      %p23 = scmp.ge.s32.totalorder %s22, 6
      %s29 = sphi 0, %s41
      %s30 = sphi 0, %s37
      %s31 = sphi 0, %s29
      %s32 = sphi 0, %s30
      %s33 = sphi 0, %s31
      %s34 = sphi 0, %s32
      %s44 = sphi 0, %s46
      %s47 = sphi 0, %s44
      %s48 = sphi 0, %s47
      %s64 = sphi 0, %s48
      %s68 = sphi 0, %s68
      %s70 = sphi 0, %s68
      %s71 = sphi 0, %s70
      %s85 = sphi 0, %s71
      %s89 = sphi 0, %s89
      %s91 = sphi 0, %s89
      %s92 = sphi 0, %s91
      %s106 = sphi 0, %s92
      %s112 = sphi 0, %s114
      %s115 = sphi 0, %s112
      %s116 = sphi 0, %s115
      %s132 = sphi 0, %s116
      %s138 = sphi 0, %s140
      %s141 = sphi 0, %s138
      %s142 = sphi 0, %s141
      %s158 = sphi 0, %s142
      %s164 = sphi 0, %s166
      %s167 = sphi 0, %s164
      %s168 = sphi 0, %s167
      %s184 = sphi 0, %s168
      %s188 = sphi 0, %s188
      %s190 = sphi 0, %s188
      %s191 = sphi 0, %s190
      %s205 = sphi 0, %s191
      %s209 = sphi 0, %s209
      %s211 = sphi 0, %s209
      %s212 = sphi 0, %s211
      %s226 = sphi 0, %s212
    $region4: #{tpu_custom_call.1} parent=1 // loop_header_branch
      %25 = sbr.rel (%p23) target = $region8
    $region5: #{tpu_custom_call.1} parent=1 // loop_body
      %s27 = ssub.s32 %s22, 1
      %s28 = ssub.s32 %s22, 2
      %s35 = sadd.s32 1, %s30
      %p36 = scmp.ge.s32.totalorder %s35, 2
      %s37 = scalar_select %p36, 0, %s35
      %s38 = sadd.s32 1, %s29
      %s39 = scalar_select %p36, %s38, %s29
      %p40 = scmp.ge.s32.totalorder %s39, 2
      %s41 = scalar_select %p40, 0, %s39
      %s42 = ssub.s32 %s30, %s37
      %p43 = scmp.eq.s32.totalorder %s42, 0
      %s45 = sadd.s32 %s44, 1
      %s46 = scalar_select %p43, %s44, %s45
      %p49 = pneg %p43
      %p50 = scmp.eq.s32.totalorder %s22, 3
      %p51 = por %p49, %p50
      %p52 = scmp.ne.s32.totalorder %s44, %s47
      %p53 = scmp.eq.s32.totalorder %s22, 0
      %p54 = por %p52, %p53
      %p55 = scmp.ne.s32.totalorder %s44, %s47
      %p56 = scmp.eq.s32.totalorder %s27, 3
      %p57 = por %p55, %p56
      %p58 = scmp.ne.s32.totalorder %s47, %s48
      %p59 = scmp.eq.s32.totalorder %s27, 0
      %p60 = por %p58, %p59
      %p61 = scmp.ne.s32.totalorder %s47, %s48
      %p62 = scmp.eq.s32.totalorder %s28, 3
      %p63 = por %p61, %p62
      %p65 = scmp.ne.s32.totalorder %s48, %s64
      %p66 = scmp.eq.s32.totalorder %s28, 0
      %p67 = por %p65, %p66
      %s69 = sadd.s32 %s68, 1
      %p72 = scmp.eq.s32.totalorder %s22, 3
      %p73 = scmp.ne.s32.totalorder %s68, %s70
      %p74 = scmp.eq.s32.totalorder %s22, 0
      %p75 = por %p73, %p74
      %p76 = scmp.ne.s32.totalorder %s68, %s70
      %p77 = scmp.eq.s32.totalorder %s27, 3
      %p78 = por %p76, %p77
      %p79 = scmp.ne.s32.totalorder %s70, %s71
      %p80 = scmp.eq.s32.totalorder %s27, 0
      %p81 = por %p79, %p80
      %p82 = scmp.ne.s32.totalorder %s70, %s71
      %p83 = scmp.eq.s32.totalorder %s28, 3
      %p84 = por %p82, %p83
      %p86 = scmp.ne.s32.totalorder %s71, %s85
      %p87 = scmp.eq.s32.totalorder %s28, 0
      %p88 = por %p86, %p87
      %s90 = sadd.s32 %s89, 1
      %p93 = scmp.eq.s32.totalorder %s22, 3
      %p94 = scmp.ne.s32.totalorder %s89, %s91
      %p95 = scmp.eq.s32.totalorder %s22, 0
      %p96 = por %p94, %p95
      %p97 = scmp.ne.s32.totalorder %s89, %s91
      %p98 = scmp.eq.s32.totalorder %s27, 3
      %p99 = por %p97, %p98
      %p100 = scmp.ne.s32.totalorder %s91, %s92
      %p101 = scmp.eq.s32.totalorder %s27, 0
      %p102 = por %p100, %p101
      %p103 = scmp.ne.s32.totalorder %s91, %s92
      %p104 = scmp.eq.s32.totalorder %s28, 3
      %p105 = por %p103, %p104
      %p107 = scmp.ne.s32.totalorder %s92, %s106
      %p108 = scmp.eq.s32.totalorder %s28, 0
      %p109 = por %p107, %p108
      %s110 = ssub.s32 %s29, %s41
      %p111 = scmp.eq.s32.totalorder %s110, 0
      %s113 = sadd.s32 %s112, 1
      %s114 = scalar_select %p111, %s112, %s113
      %p117 = pneg %p111
      %p118 = scmp.eq.s32.totalorder %s22, 3
      %p119 = por %p117, %p118
      %p120 = scmp.ne.s32.totalorder %s112, %s115
      %p121 = scmp.eq.s32.totalorder %s22, 0
      %p122 = por %p120, %p121
      %p123 = scmp.ne.s32.totalorder %s112, %s115
      %p124 = scmp.eq.s32.totalorder %s27, 3
      %p125 = por %p123, %p124
      %p126 = scmp.ne.s32.totalorder %s115, %s116
      %p127 = scmp.eq.s32.totalorder %s27, 0
      %p128 = por %p126, %p127
      %p129 = scmp.ne.s32.totalorder %s115, %s116
      %p130 = scmp.eq.s32.totalorder %s28, 3
      %p131 = por %p129, %p130
      %p133 = scmp.ne.s32.totalorder %s116, %s132
      %p134 = scmp.eq.s32.totalorder %s28, 0
      %p135 = por %p133, %p134
      %s136 = ssub.s32 %s29, %s41
      %p137 = scmp.eq.s32.totalorder %s136, 0
      %s139 = sadd.s32 %s138, 1
      %s140 = scalar_select %p137, %s138, %s139
      %p143 = pneg %p137
      %p144 = scmp.eq.s32.totalorder %s22, 3
      %p145 = por %p143, %p144
      %p146 = scmp.ne.s32.totalorder %s138, %s141
      %p147 = scmp.eq.s32.totalorder %s22, 0
      %p148 = por %p146, %p147
      %p149 = scmp.ne.s32.totalorder %s138, %s141
      %p150 = scmp.eq.s32.totalorder %s27, 3
      %p151 = por %p149, %p150
      %p152 = scmp.ne.s32.totalorder %s141, %s142
      %p153 = scmp.eq.s32.totalorder %s27, 0
      %p154 = por %p152, %p153
      %p155 = scmp.ne.s32.totalorder %s141, %s142
      %p156 = scmp.eq.s32.totalorder %s28, 3
      %p157 = por %p155, %p156
      %p159 = scmp.ne.s32.totalorder %s142, %s158
      %p160 = scmp.eq.s32.totalorder %s28, 0
      %p161 = por %p159, %p160
      %s162 = ssub.s32 %s29, %s41
      %p163 = scmp.eq.s32.totalorder %s162, 0
      %s165 = sadd.s32 %s164, 1
      %s166 = scalar_select %p163, %s164, %s165
      %p169 = pneg %p163
      %p170 = scmp.eq.s32.totalorder %s22, 3
      %p171 = por %p169, %p170
      %p172 = scmp.ne.s32.totalorder %s164, %s167
      %p173 = scmp.eq.s32.totalorder %s22, 0
      %p174 = por %p172, %p173
      %p175 = scmp.ne.s32.totalorder %s164, %s167
      %p176 = scmp.eq.s32.totalorder %s27, 3
      %p177 = por %p175, %p176
      %p178 = scmp.ne.s32.totalorder %s167, %s168
      %p179 = scmp.eq.s32.totalorder %s27, 0
      %p180 = por %p178, %p179
      %p181 = scmp.ne.s32.totalorder %s167, %s168
      %p182 = scmp.eq.s32.totalorder %s28, 3
      %p183 = por %p181, %p182
      %p185 = scmp.ne.s32.totalorder %s168, %s184
      %p186 = scmp.eq.s32.totalorder %s28, 0
      %p187 = por %p185, %p186
      %s189 = sadd.s32 %s188, 1
      %p192 = scmp.eq.s32.totalorder %s22, 3
      %p193 = scmp.ne.s32.totalorder %s188, %s190
      %p194 = scmp.eq.s32.totalorder %s22, 0
      %p195 = por %p193, %p194
      %p196 = scmp.ne.s32.totalorder %s188, %s190
      %p197 = scmp.eq.s32.totalorder %s27, 3
      %p198 = por %p196, %p197
      %p199 = scmp.ne.s32.totalorder %s190, %s191
      %p200 = scmp.eq.s32.totalorder %s27, 0
      %p201 = por %p199, %p200
      %p202 = scmp.ne.s32.totalorder %s190, %s191
      %p203 = scmp.eq.s32.totalorder %s28, 3
      %p204 = por %p202, %p203
      %p206 = scmp.ne.s32.totalorder %s191, %s205
      %p207 = scmp.eq.s32.totalorder %s28, 0
      %p208 = por %p206, %p207
      %s210 = sadd.s32 %s209, 1
      %p213 = scmp.eq.s32.totalorder %s22, 3
      %p214 = scmp.ne.s32.totalorder %s209, %s211
      %p215 = scmp.eq.s32.totalorder %s22, 0
      %p216 = por %p214, %p215
      %p217 = scmp.ne.s32.totalorder %s209, %s211
      %p218 = scmp.eq.s32.totalorder %s27, 3
      %p219 = por %p217, %p218
      %p220 = scmp.ne.s32.totalorder %s211, %s212
      %p221 = scmp.eq.s32.totalorder %s27, 0
      %p222 = por %p220, %p221
      %p223 = scmp.ne.s32.totalorder %s211, %s212
      %p224 = scmp.eq.s32.totalorder %s28, 3
      %p225 = por %p223, %p224
      %p227 = scmp.ne.s32.totalorder %s212, %s226
      %p228 = scmp.eq.s32.totalorder %s28, 0
      %p229 = por %p227, %p228
      %p230 = scmp.le.s32.totalorder 1, %s22
      %p231 = scmp.lt.s32.totalorder %s22, 5
      %p232 = pnand %p230, %p231
      %p233 = pneg %p232
      // Predicated region
      $region9: #{tpu_custom_call.1} parent=5 // pred_check
        _
      $region10: #{tpu_custom_call.1} parent=5 // pred_check_branch
        %235 = sbr.rel (%p232) target = $region12
      $region11: #{tpu_custom_call.1} parent=5 // pred_region
        %s236 = ssub.s32 %s22, 1
        // Predicated region
        $region13: #{tpu_custom_call.1} parent=11 // pred_check
          %p237 = pneg %p81
        $region14: #{tpu_custom_call.1} parent=11 // pred_check_branch
          %239 = sbr.rel (%p237) target = $region16
        $region15: #{tpu_custom_call.1} parent=11 // pred_region
          _
        $region16: #{tpu_custom_call.1} parent=11 // pred_fallthru
          _
        // Predicated region
        $region17: #{tpu_custom_call.1} parent=11 // pred_check
          %p240 = pneg %p102
        $region18: #{tpu_custom_call.1} parent=11 // pred_check_branch
          %242 = sbr.rel (%p240) target = $region20
        $region19: #{tpu_custom_call.1} parent=11 // pred_region
          _
        $region20: #{tpu_custom_call.1} parent=11 // pred_fallthru
          _
      $region12: #{tpu_custom_call.1} parent=5 // pred_fallthru
        _
      %p243 = scmp.lt.s32.totalorder %s22, 4
      // Predicated region
      $region21: #{tpu_custom_call.1} parent=5 // pred_check
        %p244 = pneg %p243
      $region22: #{tpu_custom_call.1} parent=5 // pred_check_branch
        %246 = sbr.rel (%p244) target = $region24
      $region23: #{tpu_custom_call.1} parent=5 // pred_region
        // Predicated region
        $region25: #{tpu_custom_call.1} parent=23 // pred_check
          %p247 = pneg %p54
        $region26: #{tpu_custom_call.1} parent=23 // pred_check_branch
          %249 = sbr.rel (%p247) target = $region28
        $region27: #{tpu_custom_call.1} parent=23 // pred_region
          %s250 = smul.u32 16, %s30
          %p251 = scmp.lt.s32.totalorder %s250, 31
          %s252 = scalar_select %p251, %s250, 31
          %s253 = smul.addr %s252, 2
          %s254 = smul.addr %s253, 4
          %s255 = scalar_lea.vmem %s0, %s254
          %s256 = smul.u32 16, %s30
        $region28: #{tpu_custom_call.1} parent=23 // pred_fallthru
          _
        // Predicated region
        $region29: #{tpu_custom_call.1} parent=23 // pred_check
          %p257 = pneg %p122
        $region30: #{tpu_custom_call.1} parent=23 // pred_check_branch
          %259 = sbr.rel (%p257) target = $region32
        $region31: #{tpu_custom_call.1} parent=23 // pred_region
          %s260 = sand.u32 %s112, 1
          %s261 = scalar_lea.sflag [#allocation6], %s260
          %s262 = sand.u32 %s112, 1
          %s263 = smul.addr %s262, 128
          %s264 = scalar_lea.vmem [#allocation5], %s263
          %s266 = ssub.s32 2048, 2048
          %267 = vsyncadd %s261, %s266
          %s268 = smul.addr %s29, 16
          %s269 = smul.addr %s268, 128
          %s270 = scalar_lea.hbm %s3, %s269
          %s271 = sshll.u32 %s264, 4
          %s272 = int_to_ptr.vmem [resolvable:$true] %s271
          %277 = dma.hbm_to_vmem [thread:$0]  %s270, 2048, %s272, %s261, 128, 128, 8
        $region32: #{tpu_custom_call.1} parent=23 // pred_fallthru
          _
        // Predicated region
        $region33: #{tpu_custom_call.1} parent=23 // pred_check
          %p278 = pneg %p148
        $region34: #{tpu_custom_call.1} parent=23 // pred_check_branch
          %280 = sbr.rel (%p278) target = $region36
        $region35: #{tpu_custom_call.1} parent=23 // pred_region
          %s281 = sand.u32 %s138, 1
          %s282 = scalar_lea.sflag [#allocation9], %s281
          %s283 = sand.u32 %s138, 1
          %s284 = smul.addr %s283, 128
          %s285 = scalar_lea.vmem [#allocation8], %s284
          %s287 = ssub.s32 2048, 2048
          %288 = vsyncadd %s282, %s287
          %s289 = smul.addr %s29, 16
          %s290 = smul.addr %s289, 128
          %s291 = scalar_lea.hbm %s4, %s290
          %s292 = sshll.u32 %s285, 4
          %s293 = int_to_ptr.vmem [resolvable:$true] %s292
          %298 = dma.hbm_to_vmem [thread:$0]  %s291, 2048, %s293, %s282, 128, 128, 8
        $region36: #{tpu_custom_call.1} parent=23 // pred_fallthru
          _
        // Predicated region
        $region37: #{tpu_custom_call.1} parent=23 // pred_check
          %p299 = pneg %p174
        $region38: #{tpu_custom_call.1} parent=23 // pred_check_branch
          %301 = sbr.rel (%p299) target = $region40
        $region39: #{tpu_custom_call.1} parent=23 // pred_region
          %p302 = scmp.lt.s32.totalorder %s29, 1
          %s303 = scalar_select %p302, %s29, 1
          %s304 = scalar_lea.vmem %s5, %s303
        $region40: #{tpu_custom_call.1} parent=23 // pred_fallthru
          _
      $region24: #{tpu_custom_call.1} parent=5 // pred_fallthru
        _
      %p305 = scmp.le.s32.totalorder 1, %s22
      %p306 = scmp.lt.s32.totalorder %s22, 5
      %p307 = pnand %p305, %p306
      %p308 = pneg %p307
      // Predicated region
      $region41: #{tpu_custom_call.1} parent=5 // pred_check
        _
      $region42: #{tpu_custom_call.1} parent=5 // pred_check_branch
        %310 = sbr.rel (%p307) target = $region44
      $region43: #{tpu_custom_call.1} parent=5 // pred_region
        %s311 = ssub.s32 %s22, 1
        %s312 = sand.u32 %s115, 1
        %s313 = scalar_lea.sflag [#allocation6], %s312
        %s314 = sand.u32 %s115, 1
        %s315 = smul.addr %s314, 128
        %s316 = scalar_lea.vmem [#allocation5], %s315
        // Predicated region
        $region45: #{tpu_custom_call.1} parent=43 // pred_check
          %p317 = pneg %p128
        $region46: #{tpu_custom_call.1} parent=43 // pred_check_branch
          %319 = sbr.rel (%p317) target = $region48
        $region47: #{tpu_custom_call.1} parent=43 // pred_region
          %320 = dma.done %s313, 2048
        $region48: #{tpu_custom_call.1} parent=43 // pred_fallthru
          _
        %s321 = sand.u32 %s141, 1
        %s322 = scalar_lea.sflag [#allocation9], %s321
        %s323 = sand.u32 %s141, 1
        %s324 = smul.addr %s323, 128
        %s325 = scalar_lea.vmem [#allocation8], %s324
        // Predicated region
        $region49: #{tpu_custom_call.1} parent=43 // pred_check
          %p326 = pneg %p154
        $region50: #{tpu_custom_call.1} parent=43 // pred_check_branch
          %328 = sbr.rel (%p326) target = $region52
        $region51: #{tpu_custom_call.1} parent=43 // pred_region
          %329 = dma.done %s322, 2048
        $region52: #{tpu_custom_call.1} parent=43 // pred_fallthru
          _
        %s330 = smul.u32 16, %s32
        %p331 = scmp.lt.s32.totalorder %s330, 31
        %s332 = scalar_select %p331, %s330, 31
        %s333 = smul.addr %s332, 2
        %s334 = smul.addr %s333, 4
        %s335 = scalar_lea.vmem %s0, %s334
        %p336 = pneg %p60
        %p337 = pneg %p57
        %p338 = pneg %p81
        %p339 = pneg %p78
        %p340 = pneg %p102
        %p341 = pneg %p99
        %s342 = sand.u32 %s115, 1
        %s343 = scalar_lea.sflag [#allocation6], %s342
        %s344 = sand.u32 %s115, 1
        %s345 = smul.addr %s344, 128
        %s346 = scalar_lea.vmem [#allocation5], %s345
        %p347 = pneg %p128
        %p348 = pneg %p125
        %s349 = sand.u32 %s141, 1
        %s350 = scalar_lea.sflag [#allocation9], %s349
        %s351 = sand.u32 %s141, 1
        %s352 = smul.addr %s351, 128
        %s353 = scalar_lea.vmem [#allocation8], %s352
        %p354 = pneg %p154
        %p355 = pneg %p151
        %p356 = scmp.lt.s32.totalorder %s31, 1
        %s357 = scalar_select %p356, %s31, 1
        %s358 = scalar_lea.vmem %s5, %s357
        %p359 = pneg %p180
        %p360 = pneg %p177
        %p361 = pneg %p201
        %p362 = pneg %p198
        %p363 = pneg %p222
        %p364 = pneg %p219
        %s365 = smul.u32 16, %s32
        %p366 = scmp.lt.s32.totalorder %s365, 31
        %s367 = scalar_select %p366, %s365, 31
        %s368 = smul.addr %s367, 2
        %s369 = smul.addr %s368, 4
        %s370 = scalar_lea.vmem %s0, %s369
        %s371 = smul.u32 16, %s32
        %p372 = scmp.lt.s32.totalorder %s31, 1
        %s373 = scalar_select %p372, %s31, 1
        %s374 = scalar_lea.vmem %s5, %s373
        %p375 = scmp.eq.s32.totalorder %s31, 0
        %p376 = scmp.eq.s32.totalorder %s32, 0
        %p377 = pnand %p375, %p376
        %p378 = pneg %p377
        // Predicated region
        $region53: #{tpu_custom_call.1} parent=43 // pred_check
          _
        $region54: #{tpu_custom_call.1} parent=43 // pred_check_branch
          %380 = sbr.rel (%p377) target = $region56
        $region55: #{tpu_custom_call.1} parent=43 // pred_region
          %v381 = vld [vmem:[%s1] sm:$0xff]
          %v382 = vld [vmem:[%s1 + $0x8] sm:$0xff]
          %v383 = vld [vmem:[%s1 + $0x10] sm:$0xff]
          %v384 = vld [vmem:[%s1 + $0x18] sm:$0xff]
          %v385 = vld [vmem:[%s1 + $0x20] sm:$0xff]
          %v386 = vld [vmem:[%s1 + $0x28] sm:$0xff]
          %v387 = vld [vmem:[%s1 + $0x30] sm:$0xff]
          %v388 = vld [vmem:[%s1 + $0x38] sm:$0xff]
          %v389 = vld [vmem:[%s1 + $0x40] sm:$0xff]
          %v390 = vld [vmem:[%s1 + $0x48] sm:$0xff]
          %v391 = vld [vmem:[%s1 + $0x50] sm:$0xff]
          %v392 = vld [vmem:[%s1 + $0x58] sm:$0xff]
          %v393 = vld [vmem:[%s1 + $0x60] sm:$0xff]
          %v394 = vld [vmem:[%s1 + $0x68] sm:$0xff]
          %v395 = vld [vmem:[%s1 + $0x70] sm:$0xff]
          %v396 = vld [vmem:[%s1 + $0x78] sm:$0xff]
          %v397 = vld [vmem:[%s1 + $0x80] sm:$0xff]
          %v398 = vld [vmem:[%s1 + $0x88] sm:$0xff]
          %v399 = vld [vmem:[%s1 + $0x90] sm:$0xff]
          %v400 = vld [vmem:[%s1 + $0x98] sm:$0xff]
          %v401 = vld [vmem:[%s2] sm:$0xff]
          %v402 = vld [vmem:[%s2 + $0x8] sm:$0xff]
          %v403 = vld [vmem:[%s2 + $0x10] sm:$0xff]
          %v404 = vld [vmem:[%s2 + $0x18] sm:$0xff]
          %v405 = vld [vmem:[%s2 + $0x20] sm:$0xff]
          %v406 = vld [vmem:[%s2 + $0x28] sm:$0xff]
          %v407 = vld [vmem:[%s2 + $0x30] sm:$0xff]
          %v408 = vld [vmem:[%s2 + $0x38] sm:$0xff]
          %v409 = vld [vmem:[%s2 + $0x40] sm:$0xff]
          %v410 = vld [vmem:[%s2 + $0x48] sm:$0xff]
          %v411 = vld [vmem:[%s2 + $0x50] sm:$0xff]
          %v412 = vld [vmem:[%s2 + $0x58] sm:$0xff]
          %v413 = vld [vmem:[%s2 + $0x60] sm:$0xff]
          %v414 = vld [vmem:[%s2 + $0x68] sm:$0xff]
          %v415 = vld [vmem:[%s2 + $0x70] sm:$0xff]
          %v416 = vld [vmem:[%s2 + $0x78] sm:$0xff]
          %v417 = vld [vmem:[%s2 + $0x80] sm:$0xff]
          %v418 = vld [vmem:[%s2 + $0x88] sm:$0xff]
          %v419 = vld [vmem:[%s2 + $0x90] sm:$0xff]
          %v420 = vld [vmem:[%s2 + $0x98] sm:$0xff]
          %v421 = vld [vmem:[%s2 + $0xa0] sm:$0xff]
          %v422 = vld [vmem:[%s2 + $0xa8] sm:$0xff]
          %v423 = vld [vmem:[%s2 + $0xb0] sm:$0xff]
          %v424 = vld [vmem:[%s2 + $0xb8] sm:$0xff]
          %v425 = vld [vmem:[%s2 + $0xc0] sm:$0xff]
          %v426 = vld [vmem:[%s2 + $0xc8] sm:$0xff]
          %v427 = vld [vmem:[%s2 + $0xd0] sm:$0xff]
          %v428 = vld [vmem:[%s2 + $0xd8] sm:$0xff]
          %v429 = vld [vmem:[%s2 + $0xe0] sm:$0xff]
          %v430 = vld [vmem:[%s2 + $0xe8] sm:$0xff]
          %v431 = vld [vmem:[%s2 + $0xf0] sm:$0xff]
          %v432 = vld [vmem:[%s2 + $0xf8] sm:$0xff]
          %433 = vst [vmem:[#allocation2] sm:$0xff] %v381
          %434 = vst [vmem:[#allocation2 + $0x8] sm:$0xff] %v382
          %435 = vst [vmem:[#allocation2 + $0x10] sm:$0xff] %v383
          %436 = vst [vmem:[#allocation2 + $0x18] sm:$0xff] %v384
          %437 = vst [vmem:[#allocation2 + $0x20] sm:$0xff] %v385
          %438 = vst [vmem:[#allocation2 + $0x28] sm:$0xff] %v386
          %439 = vst [vmem:[#allocation2 + $0x30] sm:$0xff] %v387
          %440 = vst [vmem:[#allocation2 + $0x38] sm:$0xff] %v388
          %441 = vst [vmem:[#allocation2 + $0x40] sm:$0xff] %v389
          %442 = vst [vmem:[#allocation2 + $0x48] sm:$0xff] %v390
          %443 = vst [vmem:[#allocation2 + $0x50] sm:$0xff] %v391
          %444 = vst [vmem:[#allocation2 + $0x58] sm:$0xff] %v392
          %445 = vst [vmem:[#allocation2 + $0x60] sm:$0xff] %v393
          %446 = vst [vmem:[#allocation2 + $0x68] sm:$0xff] %v394
          %447 = vst [vmem:[#allocation2 + $0x70] sm:$0xff] %v395
          %448 = vst [vmem:[#allocation2 + $0x78] sm:$0xff] %v396
          %449 = vst [vmem:[#allocation2 + $0x80] sm:$0xff] %v397
          %450 = vst [vmem:[#allocation2 + $0x88] sm:$0xff] %v398
          %451 = vst [vmem:[#allocation2 + $0x90] sm:$0xff] %v399
          %452 = vst [vmem:[#allocation2 + $0x98] sm:$0xff] %v400
          %453 = vst [vmem:[#allocation10] sm:$0xff] %v381
          %454 = vst [vmem:[#allocation10 + $0x8] sm:$0xff] %v382
          %455 = vst [vmem:[#allocation10 + $0x10] sm:$0xff] %v383
          %456 = vst [vmem:[#allocation10 + $0x18] sm:$0xff] %v384
          %457 = vst [vmem:[#allocation10 + $0x20] sm:$0xff] %v385
          %458 = vst [vmem:[#allocation10 + $0x28] sm:$0xff] %v386
          %459 = vst [vmem:[#allocation10 + $0x30] sm:$0xff] %v387
          %460 = vst [vmem:[#allocation10 + $0x38] sm:$0xff] %v388
          %461 = vst [vmem:[#allocation10 + $0x40] sm:$0xff] %v389
          %462 = vst [vmem:[#allocation10 + $0x48] sm:$0xff] %v390
          %463 = vst [vmem:[#allocation10 + $0x50] sm:$0xff] %v391
          %464 = vst [vmem:[#allocation10 + $0x58] sm:$0xff] %v392
          %465 = vst [vmem:[#allocation10 + $0x60] sm:$0xff] %v393
          %466 = vst [vmem:[#allocation10 + $0x68] sm:$0xff] %v394
          %467 = vst [vmem:[#allocation10 + $0x70] sm:$0xff] %v395
          %468 = vst [vmem:[#allocation10 + $0x78] sm:$0xff] %v396
          %469 = vst [vmem:[#allocation10 + $0x80] sm:$0xff] %v397
          %470 = vst [vmem:[#allocation10 + $0x88] sm:$0xff] %v398
          %471 = vst [vmem:[#allocation10 + $0x90] sm:$0xff] %v399
          %472 = vst [vmem:[#allocation10 + $0x98] sm:$0xff] %v400
          %473 = vst [vmem:[#allocation4] sm:$0xff] %v401
          %474 = vst [vmem:[#allocation4 + $0x8] sm:$0xff] %v402
          %475 = vst [vmem:[#allocation4 + $0x10] sm:$0xff] %v403
          %476 = vst [vmem:[#allocation4 + $0x18] sm:$0xff] %v404
          %477 = vst [vmem:[#allocation4 + $0x20] sm:$0xff] %v405
          %478 = vst [vmem:[#allocation4 + $0x28] sm:$0xff] %v406
          %479 = vst [vmem:[#allocation4 + $0x30] sm:$0xff] %v407
          %480 = vst [vmem:[#allocation4 + $0x38] sm:$0xff] %v408
          %481 = vst [vmem:[#allocation4 + $0x40] sm:$0xff] %v409
          %482 = vst [vmem:[#allocation4 + $0x48] sm:$0xff] %v410
          %483 = vst [vmem:[#allocation4 + $0x50] sm:$0xff] %v411
          %484 = vst [vmem:[#allocation4 + $0x58] sm:$0xff] %v412
          %485 = vst [vmem:[#allocation4 + $0x60] sm:$0xff] %v413
          %486 = vst [vmem:[#allocation4 + $0x68] sm:$0xff] %v414
          %487 = vst [vmem:[#allocation4 + $0x70] sm:$0xff] %v415
          %488 = vst [vmem:[#allocation4 + $0x78] sm:$0xff] %v416
          %489 = vst [vmem:[#allocation4 + $0x80] sm:$0xff] %v417
          %490 = vst [vmem:[#allocation4 + $0x88] sm:$0xff] %v418
          %491 = vst [vmem:[#allocation4 + $0x90] sm:$0xff] %v419
          %492 = vst [vmem:[#allocation4 + $0x98] sm:$0xff] %v420
          %493 = vst [vmem:[#allocation4 + $0xa0] sm:$0xff] %v421
          %494 = vst [vmem:[#allocation4 + $0xa8] sm:$0xff] %v422
          %495 = vst [vmem:[#allocation4 + $0xb0] sm:$0xff] %v423
          %496 = vst [vmem:[#allocation4 + $0xb8] sm:$0xff] %v424
          %497 = vst [vmem:[#allocation4 + $0xc0] sm:$0xff] %v425
          %498 = vst [vmem:[#allocation4 + $0xc8] sm:$0xff] %v426
          %499 = vst [vmem:[#allocation4 + $0xd0] sm:$0xff] %v427
          %500 = vst [vmem:[#allocation4 + $0xd8] sm:$0xff] %v428
          %501 = vst [vmem:[#allocation4 + $0xe0] sm:$0xff] %v429
          %502 = vst [vmem:[#allocation4 + $0xe8] sm:$0xff] %v430
          %503 = vst [vmem:[#allocation4 + $0xf0] sm:$0xff] %v431
          %504 = vst [vmem:[#allocation4 + $0xf8] sm:$0xff] %v432
          %505 = vst [vmem:[#allocation11] sm:$0xff] %v401
          %506 = vst [vmem:[#allocation11 + $0x8] sm:$0xff] %v402
          %507 = vst [vmem:[#allocation11 + $0x10] sm:$0xff] %v403
          %508 = vst [vmem:[#allocation11 + $0x18] sm:$0xff] %v404
          %509 = vst [vmem:[#allocation11 + $0x20] sm:$0xff] %v405
          %510 = vst [vmem:[#allocation11 + $0x28] sm:$0xff] %v406
          %511 = vst [vmem:[#allocation11 + $0x30] sm:$0xff] %v407
          %512 = vst [vmem:[#allocation11 + $0x38] sm:$0xff] %v408
          %513 = vst [vmem:[#allocation11 + $0x40] sm:$0xff] %v409
          %514 = vst [vmem:[#allocation11 + $0x48] sm:$0xff] %v410
          %515 = vst [vmem:[#allocation11 + $0x50] sm:$0xff] %v411
          %516 = vst [vmem:[#allocation11 + $0x58] sm:$0xff] %v412
          %517 = vst [vmem:[#allocation11 + $0x60] sm:$0xff] %v413
          %518 = vst [vmem:[#allocation11 + $0x68] sm:$0xff] %v414
          %519 = vst [vmem:[#allocation11 + $0x70] sm:$0xff] %v415
          %520 = vst [vmem:[#allocation11 + $0x78] sm:$0xff] %v416
          %521 = vst [vmem:[#allocation11 + $0x80] sm:$0xff] %v417
          %522 = vst [vmem:[#allocation11 + $0x88] sm:$0xff] %v418
          %523 = vst [vmem:[#allocation11 + $0x90] sm:$0xff] %v419
          %524 = vst [vmem:[#allocation11 + $0x98] sm:$0xff] %v420
          %525 = vst [vmem:[#allocation11 + $0xa0] sm:$0xff] %v421
          %526 = vst [vmem:[#allocation11 + $0xa8] sm:$0xff] %v422
          %527 = vst [vmem:[#allocation11 + $0xb0] sm:$0xff] %v423
          %528 = vst [vmem:[#allocation11 + $0xb8] sm:$0xff] %v424
          %529 = vst [vmem:[#allocation11 + $0xc0] sm:$0xff] %v425
          %530 = vst [vmem:[#allocation11 + $0xc8] sm:$0xff] %v426
          %531 = vst [vmem:[#allocation11 + $0xd0] sm:$0xff] %v427
          %532 = vst [vmem:[#allocation11 + $0xd8] sm:$0xff] %v428
          %533 = vst [vmem:[#allocation11 + $0xe0] sm:$0xff] %v429
          %534 = vst [vmem:[#allocation11 + $0xe8] sm:$0xff] %v430
          %535 = vst [vmem:[#allocation11 + $0xf0] sm:$0xff] %v431
          %536 = vst [vmem:[#allocation11 + $0xf8] sm:$0xff] %v432
        $region56: #{tpu_custom_call.1} parent=43 // pred_fallthru
          _
        %p537 = scmp.gt.s32.totalorder %s31, 0
        %p538 = pnand %p537, %p376
        %p539 = pneg %p538
        // Predicated region
        $region57: #{tpu_custom_call.1} parent=43 // pred_check
          _
        $region58: #{tpu_custom_call.1} parent=43 // pred_check_branch
          %541 = sbr.rel (%p538) target = $region60
        $region59: #{tpu_custom_call.1} parent=43 // pred_region
          %v542 = vld [vmem:[#allocation3] sm:$0xff]
          %v543 = vld [vmem:[#allocation3 + $0x8] sm:$0xff]
          %v544 = vld [vmem:[#allocation3 + $0x10] sm:$0xff]
          %v545 = vld [vmem:[#allocation3 + $0x18] sm:$0xff]
          %v546 = vld [vmem:[#allocation3 + $0x20] sm:$0xff]
          %v547 = vld [vmem:[#allocation3 + $0x28] sm:$0xff]
          %v548 = vld [vmem:[#allocation3 + $0x30] sm:$0xff]
          %v549 = vld [vmem:[#allocation3 + $0x38] sm:$0xff]
          %v550 = vld [vmem:[#allocation3 + $0x40] sm:$0xff]
          %v551 = vld [vmem:[#allocation3 + $0x48] sm:$0xff]
          %v552 = vld [vmem:[#allocation3 + $0x50] sm:$0xff]
          %v553 = vld [vmem:[#allocation3 + $0x58] sm:$0xff]
          %v554 = vld [vmem:[#allocation3 + $0x60] sm:$0xff]
          %v555 = vld [vmem:[#allocation3 + $0x68] sm:$0xff]
          %v556 = vld [vmem:[#allocation3 + $0x70] sm:$0xff]
          %v557 = vld [vmem:[#allocation3 + $0x78] sm:$0xff]
          %v558 = vld [vmem:[#allocation3 + $0x80] sm:$0xff]
          %v559 = vld [vmem:[#allocation3 + $0x88] sm:$0xff]
          %v560 = vld [vmem:[#allocation3 + $0x90] sm:$0xff]
          %v561 = vld [vmem:[#allocation3 + $0x98] sm:$0xff]
          %562 = vst [vmem:[#allocation2] sm:$0xff] %v542
          %563 = vst [vmem:[#allocation2 + $0x8] sm:$0xff] %v543
          %564 = vst [vmem:[#allocation2 + $0x10] sm:$0xff] %v544
          %565 = vst [vmem:[#allocation2 + $0x18] sm:$0xff] %v545
          %566 = vst [vmem:[#allocation2 + $0x20] sm:$0xff] %v546
          %567 = vst [vmem:[#allocation2 + $0x28] sm:$0xff] %v547
          %568 = vst [vmem:[#allocation2 + $0x30] sm:$0xff] %v548
          %569 = vst [vmem:[#allocation2 + $0x38] sm:$0xff] %v549
          %570 = vst [vmem:[#allocation2 + $0x40] sm:$0xff] %v550
          %571 = vst [vmem:[#allocation2 + $0x48] sm:$0xff] %v551
          %572 = vst [vmem:[#allocation2 + $0x50] sm:$0xff] %v552
          %573 = vst [vmem:[#allocation2 + $0x58] sm:$0xff] %v553
          %574 = vst [vmem:[#allocation2 + $0x60] sm:$0xff] %v554
          %575 = vst [vmem:[#allocation2 + $0x68] sm:$0xff] %v555
          %576 = vst [vmem:[#allocation2 + $0x70] sm:$0xff] %v556
          %577 = vst [vmem:[#allocation2 + $0x78] sm:$0xff] %v557
          %578 = vst [vmem:[#allocation2 + $0x80] sm:$0xff] %v558
          %579 = vst [vmem:[#allocation2 + $0x88] sm:$0xff] %v559
          %580 = vst [vmem:[#allocation2 + $0x90] sm:$0xff] %v560
          %581 = vst [vmem:[#allocation2 + $0x98] sm:$0xff] %v561
          %v582 = vld [vmem:[#allocation10] sm:$0xff]
          %v583 = vld [vmem:[#allocation10 + $0x8] sm:$0xff]
          %v584 = vld [vmem:[#allocation10 + $0x10] sm:$0xff]
          %v585 = vld [vmem:[#allocation10 + $0x18] sm:$0xff]
          %v586 = vld [vmem:[#allocation10 + $0x20] sm:$0xff]
          %v587 = vld [vmem:[#allocation10 + $0x28] sm:$0xff]
          %v588 = vld [vmem:[#allocation10 + $0x30] sm:$0xff]
          %v589 = vld [vmem:[#allocation10 + $0x38] sm:$0xff]
          %v590 = vld [vmem:[#allocation10 + $0x40] sm:$0xff]
          %v591 = vld [vmem:[#allocation10 + $0x48] sm:$0xff]
          %v592 = vld [vmem:[#allocation10 + $0x50] sm:$0xff]
          %v593 = vld [vmem:[#allocation10 + $0x58] sm:$0xff]
          %v594 = vld [vmem:[#allocation10 + $0x60] sm:$0xff]
          %v595 = vld [vmem:[#allocation10 + $0x68] sm:$0xff]
          %v596 = vld [vmem:[#allocation10 + $0x70] sm:$0xff]
          %v597 = vld [vmem:[#allocation10 + $0x78] sm:$0xff]
          %v598 = vld [vmem:[#allocation10 + $0x80] sm:$0xff]
          %v599 = vld [vmem:[#allocation10 + $0x88] sm:$0xff]
          %v600 = vld [vmem:[#allocation10 + $0x90] sm:$0xff]
          %v601 = vld [vmem:[#allocation10 + $0x98] sm:$0xff]
          %v602 = vadd.f32 %v582, %v542
          %v603 = vadd.f32 %v583, %v543
          %v604 = vadd.f32 %v584, %v544
          %v605 = vadd.f32 %v585, %v545
          %v606 = vadd.f32 %v586, %v546
          %v607 = vadd.f32 %v587, %v547
          %v608 = vadd.f32 %v588, %v548
          %v609 = vadd.f32 %v589, %v549
          %v610 = vadd.f32 %v590, %v550
          %v611 = vadd.f32 %v591, %v551
          %v612 = vadd.f32 %v592, %v552
          %v613 = vadd.f32 %v593, %v553
          %v614 = vadd.f32 %v594, %v554
          %v615 = vadd.f32 %v595, %v555
          %v616 = vadd.f32 %v596, %v556
          %v617 = vadd.f32 %v597, %v557
          %v618 = vadd.f32 %v598, %v558
          %v619 = vadd.f32 %v599, %v559
          %v620 = vadd.f32 %v600, %v560
          %v621 = vadd.f32 %v601, %v561
          %622 = vst [vmem:[#allocation10] sm:$0xff] %v602
          %623 = vst [vmem:[#allocation10 + $0x8] sm:$0xff] %v603
          %624 = vst [vmem:[#allocation10 + $0x10] sm:$0xff] %v604
          %625 = vst [vmem:[#allocation10 + $0x18] sm:$0xff] %v605
          %626 = vst [vmem:[#allocation10 + $0x20] sm:$0xff] %v606
          %627 = vst [vmem:[#allocation10 + $0x28] sm:$0xff] %v607
          %628 = vst [vmem:[#allocation10 + $0x30] sm:$0xff] %v608
          %629 = vst [vmem:[#allocation10 + $0x38] sm:$0xff] %v609
          %630 = vst [vmem:[#allocation10 + $0x40] sm:$0xff] %v610
          %631 = vst [vmem:[#allocation10 + $0x48] sm:$0xff] %v611
          %632 = vst [vmem:[#allocation10 + $0x50] sm:$0xff] %v612
          %633 = vst [vmem:[#allocation10 + $0x58] sm:$0xff] %v613
          %634 = vst [vmem:[#allocation10 + $0x60] sm:$0xff] %v614
          %635 = vst [vmem:[#allocation10 + $0x68] sm:$0xff] %v615
          %636 = vst [vmem:[#allocation10 + $0x70] sm:$0xff] %v616
          %637 = vst [vmem:[#allocation10 + $0x78] sm:$0xff] %v617
          %638 = vst [vmem:[#allocation10 + $0x80] sm:$0xff] %v618
          %639 = vst [vmem:[#allocation10 + $0x88] sm:$0xff] %v619
          %640 = vst [vmem:[#allocation10 + $0x90] sm:$0xff] %v620
          %641 = vst [vmem:[#allocation10 + $0x98] sm:$0xff] %v621
        $region60: #{tpu_custom_call.1} parent=43 // pred_fallthru
          _
        // Predicated region
        $region61: #{tpu_custom_call.1} parent=43 // pred_check
          %p642 = pneg %p376
        $region62: #{tpu_custom_call.1} parent=43 // pred_check_branch
          %644 = sbr.rel (%p642) target = $region64
        $region63: #{tpu_custom_call.1} parent=43 // pred_region
          %645 = vst [vmem:[#allocation3] sm:$0xff] 0.0
          %646 = vst [vmem:[#allocation3 + $0x8] sm:$0xff] 0.0
          %647 = vst [vmem:[#allocation3 + $0x10] sm:$0xff] 0.0
          %648 = vst [vmem:[#allocation3 + $0x18] sm:$0xff] 0.0
          %649 = vst [vmem:[#allocation3 + $0x20] sm:$0xff] 0.0
          %650 = vst [vmem:[#allocation3 + $0x28] sm:$0xff] 0.0
          %651 = vst [vmem:[#allocation3 + $0x30] sm:$0xff] 0.0
          %652 = vst [vmem:[#allocation3 + $0x38] sm:$0xff] 0.0
          %653 = vst [vmem:[#allocation3 + $0x40] sm:$0xff] 0.0
          %654 = vst [vmem:[#allocation3 + $0x48] sm:$0xff] 0.0
          %655 = vst [vmem:[#allocation3 + $0x50] sm:$0xff] 0.0
          %656 = vst [vmem:[#allocation3 + $0x58] sm:$0xff] 0.0
          %657 = vst [vmem:[#allocation3 + $0x60] sm:$0xff] 0.0
          %658 = vst [vmem:[#allocation3 + $0x68] sm:$0xff] 0.0
          %659 = vst [vmem:[#allocation3 + $0x70] sm:$0xff] 0.0
          %660 = vst [vmem:[#allocation3 + $0x78] sm:$0xff] 0.0
          %661 = vst [vmem:[#allocation3 + $0x80] sm:$0xff] 0.0
          %662 = vst [vmem:[#allocation3 + $0x88] sm:$0xff] 0.0
          %663 = vst [vmem:[#allocation3 + $0x90] sm:$0xff] 0.0
          %664 = vst [vmem:[#allocation3 + $0x98] sm:$0xff] 0.0
        $region64: #{tpu_custom_call.1} parent=43 // pred_fallthru
          _
        %v665 = vld [vmem:[%s316] sm:$0xff]
        %v666 = vld [vmem:[%s316 + $0x8] sm:$0xff]
        %v667 = vld [vmem:[%s316 + $0x10] sm:$0xff]
        %v668 = vld [vmem:[%s316 + $0x18] sm:$0xff]
        %v669 = vld [vmem:[%s316 + $0x20] sm:$0xff]
        %v670 = vld [vmem:[%s316 + $0x28] sm:$0xff]
        %v671 = vld [vmem:[%s316 + $0x30] sm:$0xff]
        %v672 = vld [vmem:[%s316 + $0x38] sm:$0xff]
        %v673 = vld [vmem:[%s316 + $0x40] sm:$0xff]
        %v674 = vld [vmem:[%s316 + $0x48] sm:$0xff]
        %v675 = vld [vmem:[%s316 + $0x50] sm:$0xff]
        %v676 = vld [vmem:[%s316 + $0x58] sm:$0xff]
        %v677 = vld [vmem:[%s316 + $0x60] sm:$0xff]
        %v678 = vld [vmem:[%s316 + $0x68] sm:$0xff]
        %v679 = vld [vmem:[%s316 + $0x70] sm:$0xff]
        %v680 = vld [vmem:[%s316 + $0x78] sm:$0xff]
        %v681 = vld [vmem:[%s325] sm:$0xff]
        %v682 = vld [vmem:[%s325 + $0x8] sm:$0xff]
        %v683 = vld [vmem:[%s325 + $0x10] sm:$0xff]
        %v684 = vld [vmem:[%s325 + $0x18] sm:$0xff]
        %v685 = vld [vmem:[%s325 + $0x20] sm:$0xff]
        %v686 = vld [vmem:[%s325 + $0x28] sm:$0xff]
        %v687 = vld [vmem:[%s325 + $0x30] sm:$0xff]
        %v688 = vld [vmem:[%s325 + $0x38] sm:$0xff]
        %v689 = vld [vmem:[%s325 + $0x40] sm:$0xff]
        %v690 = vld [vmem:[%s325 + $0x48] sm:$0xff]
        %v691 = vld [vmem:[%s325 + $0x50] sm:$0xff]
        %v692 = vld [vmem:[%s325 + $0x58] sm:$0xff]
        %v693 = vld [vmem:[%s325 + $0x60] sm:$0xff]
        %v694 = vld [vmem:[%s325 + $0x68] sm:$0xff]
        %v695 = vld [vmem:[%s325 + $0x70] sm:$0xff]
        %v696 = vld [vmem:[%s325 + $0x78] sm:$0xff]
        %v697 = vld [vmem:[%s374] sm:$0x1]
        %v698 = vld [vmem:[%s370] sm:$0xff]
        %v699 = vld [vmem:[%s370 + $0x8] sm:$0xff]
        %v700 = vld [vmem:[%s370 + $0x10] sm:$0xff]
        %v701 = vld [vmem:[%s370 + $0x18] sm:$0xff]
        %v702 = vld [vmem:[%s370 + $0x20] sm:$0xff]
        %v703 = vld [vmem:[%s370 + $0x28] sm:$0xff]
        %v704 = vld [vmem:[%s370 + $0x30] sm:$0xff]
        %v705 = vld [vmem:[%s370 + $0x38] sm:$0xff]
        %v706 = vld [vmem:[%s370 + $0x40] sm:$0xff]
        %v707 = vld [vmem:[%s370 + $0x48] sm:$0xff]
        %v708 = vld [vmem:[%s370 + $0x50] sm:$0xff]
        %v709 = vld [vmem:[%s370 + $0x58] sm:$0xff]
        %v710 = vld [vmem:[%s370 + $0x60] sm:$0xff]
        %v711 = vld [vmem:[%s370 + $0x68] sm:$0xff]
        %v712 = vld [vmem:[%s370 + $0x70] sm:$0xff]
        %v713 = vld [vmem:[%s370 + $0x78] sm:$0xff]
        %v714 = vunpack.c.l.bf16 %v698
        %v715 = vunpack.c.h.bf16 %v698
        %v716 = vunpack.c.l.bf16 %v699
        %v717 = vunpack.c.h.bf16 %v699
        %v718 = vunpack.c.l.bf16 %v700
        %v719 = vunpack.c.h.bf16 %v700
        %v720 = vunpack.c.l.bf16 %v701
        %v721 = vunpack.c.h.bf16 %v701
        %v722 = vunpack.c.l.bf16 %v702
        %v723 = vunpack.c.h.bf16 %v702
        %v724 = vunpack.c.l.bf16 %v703
        %v725 = vunpack.c.h.bf16 %v703
        %v726 = vunpack.c.l.bf16 %v704
        %v727 = vunpack.c.h.bf16 %v704
        %v728 = vunpack.c.l.bf16 %v705
        %v729 = vunpack.c.h.bf16 %v705
        %v730 = vunpack.c.l.bf16 %v706
        %v731 = vunpack.c.h.bf16 %v706
        %v732 = vunpack.c.l.bf16 %v707
        %v733 = vunpack.c.h.bf16 %v707
        %v734 = vunpack.c.l.bf16 %v708
        %v735 = vunpack.c.h.bf16 %v708
        %v736 = vunpack.c.l.bf16 %v709
        %v737 = vunpack.c.h.bf16 %v709
        %v738 = vunpack.c.l.bf16 %v710
        %v739 = vunpack.c.h.bf16 %v710
        %v740 = vunpack.c.l.bf16 %v711
        %v741 = vunpack.c.h.bf16 %v711
        %v742 = vunpack.c.l.bf16 %v712
        %v743 = vunpack.c.h.bf16 %v712
        %v744 = vunpack.c.l.bf16 %v713
        %v745 = vunpack.c.h.bf16 %v713
        %v746 = vld [vmem:[#allocation2] sm:$0xff]
        %v747 = vld [vmem:[#allocation2 + $0x8] sm:$0xff]
        %v748 = vld [vmem:[#allocation2 + $0x10] sm:$0xff]
        %v749 = vld [vmem:[#allocation2 + $0x18] sm:$0xff]
        %v750 = vld [vmem:[#allocation2 + $0x20] sm:$0xff]
        %v751 = vld [vmem:[#allocation2 + $0x28] sm:$0xff]
        %v752 = vld [vmem:[#allocation2 + $0x30] sm:$0xff]
        %v753 = vld [vmem:[#allocation2 + $0x38] sm:$0xff]
        %v754 = vld [vmem:[#allocation2 + $0x40] sm:$0xff]
        %v755 = vld [vmem:[#allocation2 + $0x48] sm:$0xff]
        %v756 = vld [vmem:[#allocation2 + $0x50] sm:$0xff]
        %v757 = vld [vmem:[#allocation2 + $0x58] sm:$0xff]
        %v758 = vld [vmem:[#allocation2 + $0x60] sm:$0xff]
        %v759 = vld [vmem:[#allocation2 + $0x68] sm:$0xff]
        %v760 = vld [vmem:[#allocation2 + $0x70] sm:$0xff]
        %v761 = vld [vmem:[#allocation2 + $0x78] sm:$0xff]
        %v762 = vld [vmem:[#allocation2 + $0x80] sm:$0xff]
        %v763 = vld [vmem:[#allocation2 + $0x88] sm:$0xff]
        %v764 = vld [vmem:[#allocation2 + $0x90] sm:$0xff]
        %v765 = vld [vmem:[#allocation2 + $0x98] sm:$0xff]
        %vm766 = vcmask 261120
        %v768 = vsel %vm766, %v715, 0
        %v771 = vsel %vm766, %v717, 0
        %v774 = vsel %vm766, %v719, 0
        %v777 = vsel %vm766, %v721, 0
        %v780 = vsel %vm766, %v723, 0
        %v783 = vsel %vm766, %v725, 0
        %v786 = vsel %vm766, %v727, 0
        %v789 = vsel %vm766, %v729, 0
        %v792 = vsel %vm766, %v731, 0
        %v795 = vsel %vm766, %v733, 0
        %v798 = vsel %vm766, %v735, 0
        %v801 = vsel %vm766, %v737, 0
        %v804 = vsel %vm766, %v739, 0
        %v807 = vsel %vm766, %v741, 0
        %v810 = vsel %vm766, %v743, 0
        %v813 = vsel %vm766, %v745, 0
        %815 = vmatprep.subr.mxu0 0.0
        %816 = vmatpush1.msra.mxu0 %v746
        %817 = vmatprep.subr.mxu0 0.0
        %818 = vmatpush1.msra.mxu0 %v747
        %819 = vmatprep.subr.mxu0 0.0
        %820 = vmatpush1.msra.mxu0 %v748
        %821 = vmatprep.subr.mxu0 0.0
        %822 = vmatpush1.msra.mxu0 %v749
        %823 = vmatprep.subr.mxu0 0.0
        %824 = vmatpush1.msra.mxu0 %v750
        %825 = vmatprep.subr.mxu0 0.0
        %826 = vmatpush1.msra.mxu0 %v751
        %827 = vmatprep.subr.mxu0 0.0
        %828 = vmatpush1.msra.mxu0 %v752
        %829 = vmatprep.subr.mxu0 0.0
        %830 = vmatpush1.msra.mxu0 %v753
        %831 = vmatprep.subr.mxu0 0.0
        %832 = vmatpush1.msra.mxu0 %v754
        %833 = vmatprep.subr.mxu0 0.0
        %834 = vmatpush1.msra.mxu0 %v755
        %835 = vmatprep.subr.mxu0 0.0
        %836 = vmatpush1.msra.mxu0 %v756
        %837 = vmatprep.subr.mxu0 0.0
        %838 = vmatpush1.msra.mxu0 %v757
        %839 = vmatprep.subr.mxu0 0.0
        %840 = vmatpush1.msra.mxu0 %v758
        %841 = vmatprep.subr.mxu0 0.0
        %842 = vmatpush1.msra.mxu0 %v759
        %843 = vmatprep.subr.mxu0 0.0
        %844 = vmatpush1.msra.mxu0 %v760
        %845 = vmatprep.subr.mxu0 0.0
        %846 = vmatpush1.msra.mxu0 %v761
        %847 = vmatprep.subr.mxu0 0.0
        %848 = vmatpush1.msra.mxu0 %v762
        %849 = vmatprep.subr.mxu0 0.0
        %850 = vmatpush1.msra.mxu0 %v763
        %851 = vmatprep.subr.mxu0 0.0
        %852 = vmatpush1.msra.mxu0 %v764
        %853 = vmatprep.subr.mxu0 0.0
        %854 = vmatpush1.msra.mxu0 %v765
        %855 = vmatprep.subr.mxu0 0.0
        %856 = vmatpush1.msra.mxu0 0.0
        %857 = vmatprep.subr.mxu0 0.0
        %858 = vmatpush1.msra.mxu0 0.0
        %859 = vmatprep.subr.mxu0 0.0
        %860 = vmatpush1.msra.mxu0 0.0
        %861 = vmatprep.subr.mxu0 0.0
        %862 = vmatpush1.msra.mxu0 0.0
        %863 = vmatprep.subr.mxu0 0.0
        %864 = vmatpush1.msra.mxu0 0.0
        %865 = vmatprep.subr.mxu0 0.0
        %866 = vmatpush1.msra.mxu0 0.0
        %867 = vmatprep.subr.mxu0 0.0
        %868 = vmatpush1.msra.mxu0 0.0
        %869 = vmatprep.subr.mxu0 0.0
        %870 = vmatpush1.msra.mxu0 0.0
        %871 = vmatprep.subr.mxu0 0.0
        %872 = vmatpush1.msra.mxu0 0.0
        %873 = vmatprep.subr.mxu0 0.0
        %874 = vmatpush1.msra.mxu0 0.0
        %875 = vmatprep.subr.mxu0 0.0
        %876 = vmatpush1.msra.mxu0 0.0
        %877 = vmatprep.subr.mxu0 0.0
        %878 = vmatpush1.msra.mxu0 0.0
        %879 = vmatprep.mubr.f32.mxu0 %v768
        %880 = vmatmul.mubr.f32.gmra.mrb[0].mxu0 %v714
        %v881 = vpop.f32.mrb[0].mxu0
        %v882 = vadd.f32 0.0, %v881
        %v883 = vpop.f32.mrb[0].mxu0
        %884 = vmatprep.mubr.f32.mxu0 %v771
        %885 = vmatmul.mubr.f32.gmra.mrb[0].mxu0 %v716
        %v886 = vpop.f32.mrb[0].mxu0
        %v887 = vadd.f32 0.0, %v886
        %v888 = vpop.f32.mrb[0].mxu0
        %889 = vmatprep.mubr.f32.mxu0 %v774
        %890 = vmatmul.mubr.f32.gmra.mrb[0].mxu0 %v718
        %v891 = vpop.f32.mrb[0].mxu0
        %v892 = vadd.f32 0.0, %v891
        %v893 = vpop.f32.mrb[0].mxu0
        %894 = vmatprep.mubr.f32.mxu0 %v777
        %895 = vmatmul.mubr.f32.gmra.mrb[0].mxu0 %v720
        %v896 = vpop.f32.mrb[0].mxu0
        %v897 = vadd.f32 0.0, %v896
        %v898 = vpop.f32.mrb[0].mxu0
        %899 = vmatprep.mubr.f32.mxu0 %v780
        %900 = vmatmul.mubr.f32.gmra.mrb[0].mxu0 %v722
        %v901 = vpop.f32.mrb[0].mxu0
        %v902 = vadd.f32 0.0, %v901
        %v903 = vpop.f32.mrb[0].mxu0
        %904 = vmatprep.mubr.f32.mxu0 %v783
        %905 = vmatmul.mubr.f32.gmra.mrb[0].mxu0 %v724
        %v906 = vpop.f32.mrb[0].mxu0
        %v907 = vadd.f32 0.0, %v906
        %v908 = vpop.f32.mrb[0].mxu0
        %909 = vmatprep.mubr.f32.mxu0 %v786
        %910 = vmatmul.mubr.f32.gmra.mrb[0].mxu0 %v726
        %v911 = vpop.f32.mrb[0].mxu0
        %v912 = vadd.f32 0.0, %v911
        %v913 = vpop.f32.mrb[0].mxu0
        %914 = vmatprep.mubr.f32.mxu0 %v789
        %915 = vmatmul.mubr.f32.gmra.mrb[0].mxu0 %v728
        %v916 = vpop.f32.mrb[0].mxu0
        %v917 = vadd.f32 0.0, %v916
        %v918 = vpop.f32.mrb[0].mxu0
        %919 = vmatprep.mubr.f32.mxu0 %v792
        %920 = vmatmul.mubr.f32.gmra.mrb[0].mxu0 %v730
        %v921 = vpop.f32.mrb[0].mxu0
        %v922 = vadd.f32 0.0, %v921
        %v923 = vpop.f32.mrb[0].mxu0
        %924 = vmatprep.mubr.f32.mxu0 %v795
        %925 = vmatmul.mubr.f32.gmra.mrb[0].mxu0 %v732
        %v926 = vpop.f32.mrb[0].mxu0
        %v927 = vadd.f32 0.0, %v926
        %v928 = vpop.f32.mrb[0].mxu0
        %929 = vmatprep.mubr.f32.mxu0 %v798
        %930 = vmatmul.mubr.f32.gmra.mrb[0].mxu0 %v734
        %v931 = vpop.f32.mrb[0].mxu0
        %v932 = vadd.f32 0.0, %v931
        %v933 = vpop.f32.mrb[0].mxu0
        %934 = vmatprep.mubr.f32.mxu0 %v801
        %935 = vmatmul.mubr.f32.gmra.mrb[0].mxu0 %v736
        %v936 = vpop.f32.mrb[0].mxu0
        %v937 = vadd.f32 0.0, %v936
        %v938 = vpop.f32.mrb[0].mxu0
        %939 = vmatprep.mubr.f32.mxu0 %v804
        %940 = vmatmul.mubr.f32.gmra.mrb[0].mxu0 %v738
        %v941 = vpop.f32.mrb[0].mxu0
        %v942 = vadd.f32 0.0, %v941
        %v943 = vpop.f32.mrb[0].mxu0
        %944 = vmatprep.mubr.f32.mxu0 %v807
        %945 = vmatmul.mubr.f32.gmra.mrb[0].mxu0 %v740
        %v946 = vpop.f32.mrb[0].mxu0
        %v947 = vadd.f32 0.0, %v946
        %v948 = vpop.f32.mrb[0].mxu0
        %949 = vmatprep.mubr.f32.mxu0 %v810
        %950 = vmatmul.mubr.f32.gmra.mrb[0].mxu0 %v742
        %v951 = vpop.f32.mrb[0].mxu0
        %v952 = vadd.f32 0.0, %v951
        %v953 = vpop.f32.mrb[0].mxu0
        %954 = vmatprep.mubr.f32.mxu0 %v813
        %955 = vmatmul.mubr.f32.gmra.mrb[0].mxu0 %v744
        %v956 = vpop.f32.mrb[0].mxu0
        %v957 = vadd.f32 0.0, %v956
        %v958 = vpop.f32.mrb[0].mxu0
        %959 = vdwg.mxu0
        %s960 = smul.u32 %s32, 128
        %s961 = scalar_lea.vmem [#allocation4], %s960
        %v962 = vld [vmem:[%s961] sm:$0xff]
        %v963 = vld [vmem:[%s961 + $0x8] sm:$0xff]
        %v964 = vld [vmem:[%s961 + $0x10] sm:$0xff]
        %v965 = vld [vmem:[%s961 + $0x18] sm:$0xff]
        %v966 = vld [vmem:[%s961 + $0x20] sm:$0xff]
        %v967 = vld [vmem:[%s961 + $0x28] sm:$0xff]
        %v968 = vld [vmem:[%s961 + $0x30] sm:$0xff]
        %v969 = vld [vmem:[%s961 + $0x38] sm:$0xff]
        %v970 = vld [vmem:[%s961 + $0x40] sm:$0xff]
        %v971 = vld [vmem:[%s961 + $0x48] sm:$0xff]
        %v972 = vld [vmem:[%s961 + $0x50] sm:$0xff]
        %v973 = vld [vmem:[%s961 + $0x58] sm:$0xff]
        %v974 = vld [vmem:[%s961 + $0x60] sm:$0xff]
        %v975 = vld [vmem:[%s961 + $0x68] sm:$0xff]
        %v976 = vld [vmem:[%s961 + $0x70] sm:$0xff]
        %v977 = vld [vmem:[%s961 + $0x78] sm:$0xff]
        %v978 = vmul.f32 %v882, %v962
        %v979 = vmul.f32 %v887, %v963
        %v980 = vmul.f32 %v892, %v964
        %v981 = vmul.f32 %v897, %v965
        %v982 = vmul.f32 %v902, %v966
        %v983 = vmul.f32 %v907, %v967
        %v984 = vmul.f32 %v912, %v968
        %v985 = vmul.f32 %v917, %v969
        %v986 = vmul.f32 %v922, %v970
        %v987 = vmul.f32 %v927, %v971
        %v988 = vmul.f32 %v932, %v972
        %v989 = vmul.f32 %v937, %v973
        %v990 = vmul.f32 %v942, %v974
        %v991 = vmul.f32 %v947, %v975
        %v992 = vmul.f32 %v952, %v976
        %v993 = vmul.f32 %v957, %v977
        %994 = vmatprep.subr.mxu0 0.0
        %995 = vmatpush1.msra.mxu0 %v681
        %996 = vmatprep.subr.mxu0 0.0
        %997 = vmatpush1.msra.mxu0 %v682
        %998 = vmatprep.subr.mxu0 0.0
        %999 = vmatpush1.msra.mxu0 %v683
        %1000 = vmatprep.subr.mxu0 0.0
        %1001 = vmatpush1.msra.mxu0 %v684
        %1002 = vmatprep.subr.mxu0 0.0
        %1003 = vmatpush1.msra.mxu0 %v685
        %1004 = vmatprep.subr.mxu0 0.0
        %1005 = vmatpush1.msra.mxu0 %v686
        %1006 = vmatprep.subr.mxu0 0.0
        %1007 = vmatpush1.msra.mxu0 %v687
        %1008 = vmatprep.subr.mxu0 0.0
        %1009 = vmatpush1.msra.mxu0 %v688
        %1010 = vmatprep.subr.mxu0 0.0
        %1011 = vmatpush1.msra.mxu0 %v689
        %1012 = vmatprep.subr.mxu0 0.0
        %1013 = vmatpush1.msra.mxu0 %v690
        %1014 = vmatprep.subr.mxu0 0.0
        %1015 = vmatpush1.msra.mxu0 %v691
        %1016 = vmatprep.subr.mxu0 0.0
        %1017 = vmatpush1.msra.mxu0 %v692
        %1018 = vmatprep.subr.mxu0 0.0
        %1019 = vmatpush1.msra.mxu0 %v693
        %1020 = vmatprep.subr.mxu0 0.0
        %1021 = vmatpush1.msra.mxu0 %v694
        %1022 = vmatprep.subr.mxu0 0.0
        %1023 = vmatpush1.msra.mxu0 %v695
        %1024 = vmatprep.subr.mxu0 0.0
        %1025 = vmatpush1.msra.mxu0 %v696
        %1026 = vmatprep.subr.mxu0 0.0
        %1027 = vmatpush1.msra.mxu0 0.0
        %1028 = vmatprep.subr.mxu0 0.0
        %1029 = vmatpush1.msra.mxu0 0.0
        %1030 = vmatprep.subr.mxu0 0.0
        %1031 = vmatpush1.msra.mxu0 0.0
        %1032 = vmatprep.subr.mxu0 0.0
        %1033 = vmatpush1.msra.mxu0 0.0
        %1034 = vmatprep.subr.mxu0 0.0
        %1035 = vmatpush1.msra.mxu0 0.0
        %1036 = vmatprep.subr.mxu0 0.0
        %1037 = vmatpush1.msra.mxu0 0.0
        %1038 = vmatprep.subr.mxu0 0.0
        %1039 = vmatpush1.msra.mxu0 0.0
        %1040 = vmatprep.subr.mxu0 0.0
        %1041 = vmatpush1.msra.mxu0 0.0
        %1042 = vmatprep.subr.mxu0 0.0
        %1043 = vmatpush1.msra.mxu0 0.0
        %1044 = vmatprep.subr.mxu0 0.0
        %1045 = vmatpush1.msra.mxu0 0.0
        %1046 = vmatprep.subr.mxu0 0.0
        %1047 = vmatpush1.msra.mxu0 0.0
        %1048 = vmatprep.subr.mxu0 0.0
        %1049 = vmatpush1.msra.mxu0 0.0
        %1050 = vmatprep.subr.mxu0 0.0
        %1051 = vmatpush1.msra.mxu0 0.0
        %1052 = vmatprep.subr.mxu0 0.0
        %1053 = vmatpush1.msra.mxu0 0.0
        %1054 = vmatprep.subr.mxu0 0.0
        %1055 = vmatpush1.msra.mxu0 0.0
        %1056 = vmatprep.subr.mxu0 0.0
        %1057 = vmatpush1.msra.mxu0 0.0
        %1058 = vmatprep.mubr.f32.mxu0 0.0
        %1059 = vmatmul.mubr.f32.gmra.mrb[0].mxu0 %v978
        %v1060 = vpop.f32.mrb[0].mxu0
        %v1061 = vadd.f32 0.0, %v1060
        %v1062 = vpop.f32.mrb[0].mxu0
        %1063 = vmatprep.mubr.f32.mxu0 0.0
        %1064 = vmatmul.mubr.f32.gmra.mrb[0].mxu0 %v979
        %v1065 = vpop.f32.mrb[0].mxu0
        %v1066 = vadd.f32 0.0, %v1065
        %v1067 = vpop.f32.mrb[0].mxu0
        %1068 = vmatprep.mubr.f32.mxu0 0.0
        %1069 = vmatmul.mubr.f32.gmra.mrb[0].mxu0 %v980
        %v1070 = vpop.f32.mrb[0].mxu0
        %v1071 = vadd.f32 0.0, %v1070
        %v1072 = vpop.f32.mrb[0].mxu0
        %1073 = vmatprep.mubr.f32.mxu0 0.0
        %1074 = vmatmul.mubr.f32.gmra.mrb[0].mxu0 %v981
        %v1075 = vpop.f32.mrb[0].mxu0
        %v1076 = vadd.f32 0.0, %v1075
        %v1077 = vpop.f32.mrb[0].mxu0
        %1078 = vmatprep.mubr.f32.mxu0 0.0
        %1079 = vmatmul.mubr.f32.gmra.mrb[0].mxu0 %v982
        %v1080 = vpop.f32.mrb[0].mxu0
        %v1081 = vadd.f32 0.0, %v1080
        %v1082 = vpop.f32.mrb[0].mxu0
        %1083 = vmatprep.mubr.f32.mxu0 0.0
        %1084 = vmatmul.mubr.f32.gmra.mrb[0].mxu0 %v983
        %v1085 = vpop.f32.mrb[0].mxu0
        %v1086 = vadd.f32 0.0, %v1085
        %v1087 = vpop.f32.mrb[0].mxu0
        %1088 = vmatprep.mubr.f32.mxu0 0.0
        %1089 = vmatmul.mubr.f32.gmra.mrb[0].mxu0 %v984
        %v1090 = vpop.f32.mrb[0].mxu0
        %v1091 = vadd.f32 0.0, %v1090
        %v1092 = vpop.f32.mrb[0].mxu0
        %1093 = vmatprep.mubr.f32.mxu0 0.0
        %1094 = vmatmul.mubr.f32.gmra.mrb[0].mxu0 %v985
        %v1095 = vpop.f32.mrb[0].mxu0
        %v1096 = vadd.f32 0.0, %v1095
        %v1097 = vpop.f32.mrb[0].mxu0
        %1098 = vmatprep.mubr.f32.mxu0 0.0
        %1099 = vmatmul.mubr.f32.gmra.mrb[0].mxu0 %v986
        %v1100 = vpop.f32.mrb[0].mxu0
        %v1101 = vadd.f32 0.0, %v1100
        %v1102 = vpop.f32.mrb[0].mxu0
        %1103 = vmatprep.mubr.f32.mxu0 0.0
        %1104 = vmatmul.mubr.f32.gmra.mrb[0].mxu0 %v987
        %v1105 = vpop.f32.mrb[0].mxu0
        %v1106 = vadd.f32 0.0, %v1105
        %v1107 = vpop.f32.mrb[0].mxu0
        %1108 = vmatprep.mubr.f32.mxu0 0.0
        %1109 = vmatmul.mubr.f32.gmra.mrb[0].mxu0 %v988
        %v1110 = vpop.f32.mrb[0].mxu0
        %v1111 = vadd.f32 0.0, %v1110
        %v1112 = vpop.f32.mrb[0].mxu0
        %1113 = vmatprep.mubr.f32.mxu0 0.0
        %1114 = vmatmul.mubr.f32.gmra.mrb[0].mxu0 %v989
        %v1115 = vpop.f32.mrb[0].mxu0
        %v1116 = vadd.f32 0.0, %v1115
        %v1117 = vpop.f32.mrb[0].mxu0
        %1118 = vmatprep.mubr.f32.mxu0 0.0
        %1119 = vmatmul.mubr.f32.gmra.mrb[0].mxu0 %v990
        %v1120 = vpop.f32.mrb[0].mxu0
        %v1121 = vadd.f32 0.0, %v1120
        %v1122 = vpop.f32.mrb[0].mxu0
        %1123 = vmatprep.mubr.f32.mxu0 0.0
        %1124 = vmatmul.mubr.f32.gmra.mrb[0].mxu0 %v991
        %v1125 = vpop.f32.mrb[0].mxu0
        %v1126 = vadd.f32 0.0, %v1125
        %v1127 = vpop.f32.mrb[0].mxu0
        %1128 = vmatprep.mubr.f32.mxu0 0.0
        %1129 = vmatmul.mubr.f32.gmra.mrb[0].mxu0 %v992
        %v1130 = vpop.f32.mrb[0].mxu0
        %v1131 = vadd.f32 0.0, %v1130
        %v1132 = vpop.f32.mrb[0].mxu0
        %1133 = vmatprep.mubr.f32.mxu0 0.0
        %1134 = vmatmul.mubr.f32.gmra.mrb[0].mxu0 %v993
        %v1135 = vpop.f32.mrb[0].mxu0
        %v1136 = vadd.f32 0.0, %v1135
        %v1137 = vpop.f32.mrb[0].mxu0
        %1138 = vdwg.mxu0
        %1139 = vmatprep.subr.mxu0 0.0
        %1140 = vmatpush1.msra.mxu0 %v665
        %1141 = vmatprep.subr.mxu0 0.0
        %1142 = vmatpush1.msra.mxu0 %v666
        %1143 = vmatprep.subr.mxu0 0.0
        %1144 = vmatpush1.msra.mxu0 %v667
        %1145 = vmatprep.subr.mxu0 0.0
        %1146 = vmatpush1.msra.mxu0 %v668
        %1147 = vmatprep.subr.mxu0 0.0
        %1148 = vmatpush1.msra.mxu0 %v669
        %1149 = vmatprep.subr.mxu0 0.0
        %1150 = vmatpush1.msra.mxu0 %v670
        %1151 = vmatprep.subr.mxu0 0.0
        %1152 = vmatpush1.msra.mxu0 %v671
        %1153 = vmatprep.subr.mxu0 0.0
        %1154 = vmatpush1.msra.mxu0 %v672
        %1155 = vmatprep.subr.mxu0 0.0
        %1156 = vmatpush1.msra.mxu0 %v673
        %1157 = vmatprep.subr.mxu0 0.0
        %1158 = vmatpush1.msra.mxu0 %v674
        %1159 = vmatprep.subr.mxu0 0.0
        %1160 = vmatpush1.msra.mxu0 %v675
        %1161 = vmatprep.subr.mxu0 0.0
        %1162 = vmatpush1.msra.mxu0 %v676
        %1163 = vmatprep.subr.mxu0 0.0
        %1164 = vmatpush1.msra.mxu0 %v677
        %1165 = vmatprep.subr.mxu0 0.0
        %1166 = vmatpush1.msra.mxu0 %v678
        %1167 = vmatprep.subr.mxu0 0.0
        %1168 = vmatpush1.msra.mxu0 %v679
        %1169 = vmatprep.subr.mxu0 0.0
        %1170 = vmatpush1.msra.mxu0 %v680
        %1171 = vmatprep.subr.mxu0 0.0
        %1172 = vmatpush1.msra.mxu0 0.0
        %1173 = vmatprep.subr.mxu0 0.0
        %1174 = vmatpush1.msra.mxu0 0.0
        %1175 = vmatprep.subr.mxu0 0.0
        %1176 = vmatpush1.msra.mxu0 0.0
        %1177 = vmatprep.subr.mxu0 0.0
        %1178 = vmatpush1.msra.mxu0 0.0
        %1179 = vmatprep.subr.mxu0 0.0
        %1180 = vmatpush1.msra.mxu0 0.0
        %1181 = vmatprep.subr.mxu0 0.0
        %1182 = vmatpush1.msra.mxu0 0.0
        %1183 = vmatprep.subr.mxu0 0.0
        %1184 = vmatpush1.msra.mxu0 0.0
        %1185 = vmatprep.subr.mxu0 0.0
        %1186 = vmatpush1.msra.mxu0 0.0
        %1187 = vmatprep.subr.mxu0 0.0
        %1188 = vmatpush1.msra.mxu0 0.0
        %1189 = vmatprep.subr.mxu0 0.0
        %1190 = vmatpush1.msra.mxu0 0.0
        %1191 = vmatprep.subr.mxu0 0.0
        %1192 = vmatpush1.msra.mxu0 0.0
        %1193 = vmatprep.subr.mxu0 0.0
        %1194 = vmatpush1.msra.mxu0 0.0
        %1195 = vmatprep.subr.mxu0 0.0
        %1196 = vmatpush1.msra.mxu0 0.0
        %1197 = vmatprep.subr.mxu0 0.0
        %1198 = vmatpush1.msra.mxu0 0.0
        %1199 = vmatprep.subr.mxu0 0.0
        %1200 = vmatpush1.msra.mxu0 0.0
        %1201 = vmatprep.subr.mxu0 0.0
        %1202 = vmatpush1.msra.mxu0 0.0
        %1203 = vmatprep.mubr.f32.mxu0 0.0
        %1204 = vmatmul.mubr.f32.gmra.mrb[0].mxu0 %v882
        %v1205 = vpop.f32.mrb[0].mxu0
        %v1206 = vadd.f32 %v1061, %v1205
        %v1207 = vpop.f32.mrb[0].mxu0
        %1208 = vmatprep.mubr.f32.mxu0 0.0
        %1209 = vmatmul.mubr.f32.gmra.mrb[0].mxu0 %v887
        %v1210 = vpop.f32.mrb[0].mxu0
        %v1211 = vadd.f32 %v1066, %v1210
        %v1212 = vpop.f32.mrb[0].mxu0
        %1213 = vmatprep.mubr.f32.mxu0 0.0
        %1214 = vmatmul.mubr.f32.gmra.mrb[0].mxu0 %v892
        %v1215 = vpop.f32.mrb[0].mxu0
        %v1216 = vadd.f32 %v1071, %v1215
        %v1217 = vpop.f32.mrb[0].mxu0
        %1218 = vmatprep.mubr.f32.mxu0 0.0
        %1219 = vmatmul.mubr.f32.gmra.mrb[0].mxu0 %v897
        %v1220 = vpop.f32.mrb[0].mxu0
        %v1221 = vadd.f32 %v1076, %v1220
        %v1222 = vpop.f32.mrb[0].mxu0
        %1223 = vmatprep.mubr.f32.mxu0 0.0
        %1224 = vmatmul.mubr.f32.gmra.mrb[0].mxu0 %v902
        %v1225 = vpop.f32.mrb[0].mxu0
        %v1226 = vadd.f32 %v1081, %v1225
        %v1227 = vpop.f32.mrb[0].mxu0
        %1228 = vmatprep.mubr.f32.mxu0 0.0
        %1229 = vmatmul.mubr.f32.gmra.mrb[0].mxu0 %v907
        %v1230 = vpop.f32.mrb[0].mxu0
        %v1231 = vadd.f32 %v1086, %v1230
        %v1232 = vpop.f32.mrb[0].mxu0
        %1233 = vmatprep.mubr.f32.mxu0 0.0
        %1234 = vmatmul.mubr.f32.gmra.mrb[0].mxu0 %v912
        %v1235 = vpop.f32.mrb[0].mxu0
        %v1236 = vadd.f32 %v1091, %v1235
        %v1237 = vpop.f32.mrb[0].mxu0
        %1238 = vmatprep.mubr.f32.mxu0 0.0
        %1239 = vmatmul.mubr.f32.gmra.mrb[0].mxu0 %v917
        %v1240 = vpop.f32.mrb[0].mxu0
        %v1241 = vadd.f32 %v1096, %v1240
        %v1242 = vpop.f32.mrb[0].mxu0
        %1243 = vmatprep.mubr.f32.mxu0 0.0
        %1244 = vmatmul.mubr.f32.gmra.mrb[0].mxu0 %v922
        %v1245 = vpop.f32.mrb[0].mxu0
        %v1246 = vadd.f32 %v1101, %v1245
        %v1247 = vpop.f32.mrb[0].mxu0
        %1248 = vmatprep.mubr.f32.mxu0 0.0
        %1249 = vmatmul.mubr.f32.gmra.mrb[0].mxu0 %v927
        %v1250 = vpop.f32.mrb[0].mxu0
        %v1251 = vadd.f32 %v1106, %v1250
        %v1252 = vpop.f32.mrb[0].mxu0
        %1253 = vmatprep.mubr.f32.mxu0 0.0
        %1254 = vmatmul.mubr.f32.gmra.mrb[0].mxu0 %v932
        %v1255 = vpop.f32.mrb[0].mxu0
        %v1256 = vadd.f32 %v1111, %v1255
        %v1257 = vpop.f32.mrb[0].mxu0
        %1258 = vmatprep.mubr.f32.mxu0 0.0
        %1259 = vmatmul.mubr.f32.gmra.mrb[0].mxu0 %v937
        %v1260 = vpop.f32.mrb[0].mxu0
        %v1261 = vadd.f32 %v1116, %v1260
        %v1262 = vpop.f32.mrb[0].mxu0
        %1263 = vmatprep.mubr.f32.mxu0 0.0
        %1264 = vmatmul.mubr.f32.gmra.mrb[0].mxu0 %v942
        %v1265 = vpop.f32.mrb[0].mxu0
        %v1266 = vadd.f32 %v1121, %v1265
        %v1267 = vpop.f32.mrb[0].mxu0
        %1268 = vmatprep.mubr.f32.mxu0 0.0
        %1269 = vmatmul.mubr.f32.gmra.mrb[0].mxu0 %v947
        %v1270 = vpop.f32.mrb[0].mxu0
        %v1271 = vadd.f32 %v1126, %v1270
        %v1272 = vpop.f32.mrb[0].mxu0
        %1273 = vmatprep.mubr.f32.mxu0 0.0
        %1274 = vmatmul.mubr.f32.gmra.mrb[0].mxu0 %v952
        %v1275 = vpop.f32.mrb[0].mxu0
        %v1276 = vadd.f32 %v1131, %v1275
        %v1277 = vpop.f32.mrb[0].mxu0
        %1278 = vmatprep.mubr.f32.mxu0 0.0
        %1279 = vmatmul.mubr.f32.gmra.mrb[0].mxu0 %v957
        %v1280 = vpop.f32.mrb[0].mxu0
        %v1281 = vadd.f32 %v1136, %v1280
        %v1282 = vpop.f32.mrb[0].mxu0
        %1283 = vdwg.mxu0
        %v1285 = vlaneseq
        %v1286 = vshrl.u32 %v1285, 7
        %v1287 = vsub.s32 0, %v1286
        %v1288 = vrot.slane %v697, %v1287
        %v1290 = vadd.f32 %v1206, %v1288
        %v1291 = vadd.f32 %v1211, %v1288
        %v1292 = vadd.f32 %v1216, %v1288
        %v1293 = vadd.f32 %v1221, %v1288
        %v1294 = vadd.f32 %v1226, %v1288
        %v1295 = vadd.f32 %v1231, %v1288
        %v1296 = vadd.f32 %v1236, %v1288
        %v1297 = vadd.f32 %v1241, %v1288
        %v1298 = vadd.f32 %v1246, %v1288
        %v1299 = vadd.f32 %v1251, %v1288
        %v1300 = vadd.f32 %v1256, %v1288
        %v1301 = vadd.f32 %v1261, %v1288
        %v1302 = vadd.f32 %v1266, %v1288
        %v1303 = vadd.f32 %v1271, %v1288
        %v1304 = vadd.f32 %v1276, %v1288
        %v1305 = vadd.f32 %v1281, %v1288
        %1306 = vst [vmem:[%s961] sm:$0xff] %v1290
        %1307 = vst [vmem:[%s961 + $0x8] sm:$0xff] %v1291
        %1308 = vst [vmem:[%s961 + $0x10] sm:$0xff] %v1292
        %1309 = vst [vmem:[%s961 + $0x18] sm:$0xff] %v1293
        %1310 = vst [vmem:[%s961 + $0x20] sm:$0xff] %v1294
        %1311 = vst [vmem:[%s961 + $0x28] sm:$0xff] %v1295
        %1312 = vst [vmem:[%s961 + $0x30] sm:$0xff] %v1296
        %1313 = vst [vmem:[%s961 + $0x38] sm:$0xff] %v1297
        %1314 = vst [vmem:[%s961 + $0x40] sm:$0xff] %v1298
        %1315 = vst [vmem:[%s961 + $0x48] sm:$0xff] %v1299
        %1316 = vst [vmem:[%s961 + $0x50] sm:$0xff] %v1300
        %1317 = vst [vmem:[%s961 + $0x58] sm:$0xff] %v1301
        %1318 = vst [vmem:[%s961 + $0x60] sm:$0xff] %v1302
        %1319 = vst [vmem:[%s961 + $0x68] sm:$0xff] %v1303
        %1320 = vst [vmem:[%s961 + $0x70] sm:$0xff] %v1304
        %1321 = vst [vmem:[%s961 + $0x78] sm:$0xff] %v1305
        %s1322 = scalar_lea.vmem [#allocation11], %s960
        %v1323 = vld [vmem:[%s1322] sm:$0xff]
        %v1324 = vld [vmem:[%s1322 + $0x8] sm:$0xff]
        %v1325 = vld [vmem:[%s1322 + $0x10] sm:$0xff]
        %v1326 = vld [vmem:[%s1322 + $0x18] sm:$0xff]
        %v1327 = vld [vmem:[%s1322 + $0x20] sm:$0xff]
        %v1328 = vld [vmem:[%s1322 + $0x28] sm:$0xff]
        %v1329 = vld [vmem:[%s1322 + $0x30] sm:$0xff]
        %v1330 = vld [vmem:[%s1322 + $0x38] sm:$0xff]
        %v1331 = vld [vmem:[%s1322 + $0x40] sm:$0xff]
        %v1332 = vld [vmem:[%s1322 + $0x48] sm:$0xff]
        %v1333 = vld [vmem:[%s1322 + $0x50] sm:$0xff]
        %v1334 = vld [vmem:[%s1322 + $0x58] sm:$0xff]
        %v1335 = vld [vmem:[%s1322 + $0x60] sm:$0xff]
        %v1336 = vld [vmem:[%s1322 + $0x68] sm:$0xff]
        %v1337 = vld [vmem:[%s1322 + $0x70] sm:$0xff]
        %v1338 = vld [vmem:[%s1322 + $0x78] sm:$0xff]
        %v1339 = vadd.f32 %v1323, %v1290
        %v1340 = vadd.f32 %v1324, %v1291
        %v1341 = vadd.f32 %v1325, %v1292
        %v1342 = vadd.f32 %v1326, %v1293
        %v1343 = vadd.f32 %v1327, %v1294
        %v1344 = vadd.f32 %v1328, %v1295
        %v1345 = vadd.f32 %v1329, %v1296
        %v1346 = vadd.f32 %v1330, %v1297
        %v1347 = vadd.f32 %v1331, %v1298
        %v1348 = vadd.f32 %v1332, %v1299
        %v1349 = vadd.f32 %v1333, %v1300
        %v1350 = vadd.f32 %v1334, %v1301
        %v1351 = vadd.f32 %v1335, %v1302
        %v1352 = vadd.f32 %v1336, %v1303
        %v1353 = vadd.f32 %v1337, %v1304
        %v1354 = vadd.f32 %v1338, %v1305
        %1355 = vst [vmem:[%s1322] sm:$0xff] %v1339
        %1356 = vst [vmem:[%s1322 + $0x8] sm:$0xff] %v1340
        %1357 = vst [vmem:[%s1322 + $0x10] sm:$0xff] %v1341
        %1358 = vst [vmem:[%s1322 + $0x18] sm:$0xff] %v1342
        %1359 = vst [vmem:[%s1322 + $0x20] sm:$0xff] %v1343
        %1360 = vst [vmem:[%s1322 + $0x28] sm:$0xff] %v1344
        %1361 = vst [vmem:[%s1322 + $0x30] sm:$0xff] %v1345
        %1362 = vst [vmem:[%s1322 + $0x38] sm:$0xff] %v1346
        %1363 = vst [vmem:[%s1322 + $0x40] sm:$0xff] %v1347
        %1364 = vst [vmem:[%s1322 + $0x48] sm:$0xff] %v1348
        %1365 = vst [vmem:[%s1322 + $0x50] sm:$0xff] %v1349
        %1366 = vst [vmem:[%s1322 + $0x58] sm:$0xff] %v1350
        %1367 = vst [vmem:[%s1322 + $0x60] sm:$0xff] %v1351
        %1368 = vst [vmem:[%s1322 + $0x68] sm:$0xff] %v1352
        %1369 = vst [vmem:[%s1322 + $0x70] sm:$0xff] %v1353
        %1370 = vst [vmem:[%s1322 + $0x78] sm:$0xff] %v1354
        %v1371 = vld [vmem:[#allocation3] sm:$0xff]
        %v1372 = vld [vmem:[#allocation3 + $0x8] sm:$0xff]
        %v1373 = vld [vmem:[#allocation3 + $0x10] sm:$0xff]
        %v1374 = vld [vmem:[#allocation3 + $0x18] sm:$0xff]
        %v1375 = vld [vmem:[#allocation3 + $0x20] sm:$0xff]
        %v1376 = vld [vmem:[#allocation3 + $0x28] sm:$0xff]
        %v1377 = vld [vmem:[#allocation3 + $0x30] sm:$0xff]
        %v1378 = vld [vmem:[#allocation3 + $0x38] sm:$0xff]
        %v1379 = vld [vmem:[#allocation3 + $0x40] sm:$0xff]
        %v1380 = vld [vmem:[#allocation3 + $0x48] sm:$0xff]
        %v1381 = vld [vmem:[#allocation3 + $0x50] sm:$0xff]
        %v1382 = vld [vmem:[#allocation3 + $0x58] sm:$0xff]
        %v1383 = vld [vmem:[#allocation3 + $0x60] sm:$0xff]
        %v1384 = vld [vmem:[#allocation3 + $0x68] sm:$0xff]
        %v1385 = vld [vmem:[#allocation3 + $0x70] sm:$0xff]
        %v1386 = vld [vmem:[#allocation3 + $0x78] sm:$0xff]
        %v1387 = vld [vmem:[#allocation3 + $0x80] sm:$0xff]
        %v1388 = vld [vmem:[#allocation3 + $0x88] sm:$0xff]
        %v1389 = vld [vmem:[#allocation3 + $0x90] sm:$0xff]
        %v1390 = vld [vmem:[#allocation3 + $0x98] sm:$0xff]
        %1391 = vxpose.xlu0.b32.start [1/16] %v714, 128
        %1392 = vxpose.xlu0.b32.cont [2/16] %v716, 128
        %1393 = vxpose.xlu0.b32.cont [3/16] %v718, 128
        %1394 = vxpose.xlu0.b32.cont [4/16] %v720, 128
        %1395 = vxpose.xlu0.b32.cont [5/16] %v722, 128
        %1396 = vxpose.xlu0.b32.cont [6/16] %v724, 128
        %1397 = vxpose.xlu0.b32.cont [7/16] %v726, 128
        %1398 = vxpose.xlu0.b32.cont [8/16] %v728, 128
        %1399 = vxpose.xlu0.b32.cont [9/16] %v730, 128
        %1400 = vxpose.xlu0.b32.cont [10/16] %v732, 128
        %1401 = vxpose.xlu0.b32.cont [11/16] %v734, 128
        %1402 = vxpose.xlu0.b32.cont [12/16] %v736, 128
        %1403 = vxpose.xlu0.b32.cont [13/16] %v738, 128
        %1404 = vxpose.xlu0.b32.cont [14/16] %v740, 128
        %1405 = vxpose.xlu0.b32.cont [15/16] %v742, 128
        %1406 = vxpose.xlu0.b32.end [16/16] %v744, 128
        %v1407 = vpop.trf.xlu0
        %v1408 = vpop.trf.xlu0
        %v1409 = vpop.trf.xlu0
        %v1410 = vpop.trf.xlu0
        %v1411 = vpop.trf.xlu0
        %v1412 = vpop.trf.xlu0
        %v1413 = vpop.trf.xlu0
        %v1414 = vpop.trf.xlu0
        %v1415 = vpop.trf.xlu0
        %v1416 = vpop.trf.xlu0
        %v1417 = vpop.trf.xlu0
        %v1418 = vpop.trf.xlu0
        %v1419 = vpop.trf.xlu0
        %v1420 = vpop.trf.xlu0
        %v1421 = vpop.trf.xlu0
        %v1422 = vpop.trf.xlu0
        %1423 = vxpose.xlu0.b32.start [1/16] %v715, 128
        %1424 = vxpose.xlu0.b32.cont [2/16] %v717, 128
        %1425 = vxpose.xlu0.b32.cont [3/16] %v719, 128
        %1426 = vxpose.xlu0.b32.cont [4/16] %v721, 128
        %1427 = vxpose.xlu0.b32.cont [5/16] %v723, 128
        %1428 = vxpose.xlu0.b32.cont [6/16] %v725, 128
        %1429 = vxpose.xlu0.b32.cont [7/16] %v727, 128
        %1430 = vxpose.xlu0.b32.cont [8/16] %v729, 128
        %1431 = vxpose.xlu0.b32.cont [9/16] %v731, 128
        %1432 = vxpose.xlu0.b32.cont [10/16] %v733, 128
        %1433 = vxpose.xlu0.b32.cont [11/16] %v735, 128
        %1434 = vxpose.xlu0.b32.cont [12/16] %v737, 128
        %1435 = vxpose.xlu0.b32.cont [13/16] %v739, 128
        %1436 = vxpose.xlu0.b32.cont [14/16] %v741, 128
        %1437 = vxpose.xlu0.b32.cont [15/16] %v743, 128
        %1438 = vxpose.xlu0.b32.end [16/16] %v745, 128
        %v1439 = vpop.trf.xlu0
        %v1440 = vpop.trf.xlu0
        %v1441 = vpop.trf.xlu0
        %v1442 = vpop.trf.xlu0
        %v1443 = vpop.trf.xlu0
        %v1444 = vpop.trf.xlu0
        %v1445 = vpop.trf.xlu0
        %v1446 = vpop.trf.xlu0
        %v1447 = vpop.trf.xlu0
        %v1448 = vpop.trf.xlu0
        %v1449 = vpop.trf.xlu0
        %v1450 = vpop.trf.xlu0
        %v1451 = vpop.trf.xlu0
        %v1452 = vpop.trf.xlu0
        %v1453 = vpop.trf.xlu0
        %v1454 = vpop.trf.xlu0
        %1455 = vmatprep.subr.mxu0 0.0
        %1456 = vmatpush1.msra.mxu0 %v1290
        %1457 = vmatprep.subr.mxu0 0.0
        %1458 = vmatpush1.msra.mxu0 %v1291
        %1459 = vmatprep.subr.mxu0 0.0
        %1460 = vmatpush1.msra.mxu0 %v1292
        %1461 = vmatprep.subr.mxu0 0.0
        %1462 = vmatpush1.msra.mxu0 %v1293
        %1463 = vmatprep.subr.mxu0 0.0
        %1464 = vmatpush1.msra.mxu0 %v1294
        %1465 = vmatprep.subr.mxu0 0.0
        %1466 = vmatpush1.msra.mxu0 %v1295
        %1467 = vmatprep.subr.mxu0 0.0
        %1468 = vmatpush1.msra.mxu0 %v1296
        %1469 = vmatprep.subr.mxu0 0.0
        %1470 = vmatpush1.msra.mxu0 %v1297
        %1471 = vmatprep.subr.mxu0 0.0
        %1472 = vmatpush1.msra.mxu0 %v1298
        %1473 = vmatprep.subr.mxu0 0.0
        %1474 = vmatpush1.msra.mxu0 %v1299
        %1475 = vmatprep.subr.mxu0 0.0
        %1476 = vmatpush1.msra.mxu0 %v1300
        %1477 = vmatprep.subr.mxu0 0.0
        %1478 = vmatpush1.msra.mxu0 %v1301
        %1479 = vmatprep.subr.mxu0 0.0
        %1480 = vmatpush1.msra.mxu0 %v1302
        %1481 = vmatprep.subr.mxu0 0.0
        %1482 = vmatpush1.msra.mxu0 %v1303
        %1483 = vmatprep.subr.mxu0 0.0
        %1484 = vmatpush1.msra.mxu0 %v1304
        %1485 = vmatprep.subr.mxu0 0.0
        %1486 = vmatpush1.msra.mxu0 %v1305
        %1487 = vmatprep.subr.mxu0 0.0
        %1488 = vmatpush1.msra.mxu0 0.0
        %1489 = vmatprep.subr.mxu0 0.0
        %1490 = vmatpush1.msra.mxu0 0.0
        %1491 = vmatprep.subr.mxu0 0.0
        %1492 = vmatpush1.msra.mxu0 0.0
        %1493 = vmatprep.subr.mxu0 0.0
        %1494 = vmatpush1.msra.mxu0 0.0
        %1495 = vmatprep.subr.mxu0 0.0
        %1496 = vmatpush1.msra.mxu0 0.0
        %1497 = vmatprep.subr.mxu0 0.0
        %1498 = vmatpush1.msra.mxu0 0.0
        %1499 = vmatprep.subr.mxu0 0.0
        %1500 = vmatpush1.msra.mxu0 0.0
        %1501 = vmatprep.subr.mxu0 0.0
        %1502 = vmatpush1.msra.mxu0 0.0
        %1503 = vmatprep.subr.mxu0 0.0
        %1504 = vmatpush1.msra.mxu0 0.0
        %1505 = vmatprep.subr.mxu0 0.0
        %1506 = vmatpush1.msra.mxu0 0.0
        %1507 = vmatprep.subr.mxu0 0.0
        %1508 = vmatpush1.msra.mxu0 0.0
        %1509 = vmatprep.subr.mxu0 0.0
        %1510 = vmatpush1.msra.mxu0 0.0
        %1511 = vmatprep.subr.mxu0 0.0
        %1512 = vmatpush1.msra.mxu0 0.0
        %1513 = vmatprep.subr.mxu0 0.0
        %1514 = vmatpush1.msra.mxu0 0.0
        %1515 = vmatprep.subr.mxu0 0.0
        %1516 = vmatpush1.msra.mxu0 0.0
        %1517 = vmatprep.subr.mxu0 0.0
        %1518 = vmatpush1.msra.mxu0 0.0
        %1519 = vmatprep.mubr.f32.mxu0 0.0
        %1520 = vmatmul.mubr.f32.gmra.mrb[0].mxu0 %v1407
        %v1521 = vpop.f32.mrb[0].mxu0
        %v1522 = vadd.f32 0.0, %v1521
        %v1523 = vpop.f32.mrb[0].mxu0
        %1524 = vmatprep.mubr.f32.mxu0 0.0
        %1525 = vmatmul.mubr.f32.gmra.mrb[0].mxu0 %v1408
        %v1526 = vpop.f32.mrb[0].mxu0
        %v1527 = vadd.f32 0.0, %v1526
        %v1528 = vpop.f32.mrb[0].mxu0
        %1529 = vmatprep.mubr.f32.mxu0 0.0
        %1530 = vmatmul.mubr.f32.gmra.mrb[0].mxu0 %v1409
        %v1531 = vpop.f32.mrb[0].mxu0
        %v1532 = vadd.f32 0.0, %v1531
        %v1533 = vpop.f32.mrb[0].mxu0
        %1534 = vmatprep.mubr.f32.mxu0 0.0
        %1535 = vmatmul.mubr.f32.gmra.mrb[0].mxu0 %v1410
        %v1536 = vpop.f32.mrb[0].mxu0
        %v1537 = vadd.f32 0.0, %v1536
        %v1538 = vpop.f32.mrb[0].mxu0
        %1539 = vmatprep.mubr.f32.mxu0 0.0
        %1540 = vmatmul.mubr.f32.gmra.mrb[0].mxu0 %v1411
        %v1541 = vpop.f32.mrb[0].mxu0
        %v1542 = vadd.f32 0.0, %v1541
        %v1543 = vpop.f32.mrb[0].mxu0
        %1544 = vmatprep.mubr.f32.mxu0 0.0
        %1545 = vmatmul.mubr.f32.gmra.mrb[0].mxu0 %v1412
        %v1546 = vpop.f32.mrb[0].mxu0
        %v1547 = vadd.f32 0.0, %v1546
        %v1548 = vpop.f32.mrb[0].mxu0
        %1549 = vmatprep.mubr.f32.mxu0 0.0
        %1550 = vmatmul.mubr.f32.gmra.mrb[0].mxu0 %v1413
        %v1551 = vpop.f32.mrb[0].mxu0
        %v1552 = vadd.f32 0.0, %v1551
        %v1553 = vpop.f32.mrb[0].mxu0
        %1554 = vmatprep.mubr.f32.mxu0 0.0
        %1555 = vmatmul.mubr.f32.gmra.mrb[0].mxu0 %v1414
        %v1556 = vpop.f32.mrb[0].mxu0
        %v1557 = vadd.f32 0.0, %v1556
        %v1558 = vpop.f32.mrb[0].mxu0
        %1559 = vmatprep.mubr.f32.mxu0 0.0
        %1560 = vmatmul.mubr.f32.gmra.mrb[0].mxu0 %v1415
        %v1561 = vpop.f32.mrb[0].mxu0
        %v1562 = vadd.f32 0.0, %v1561
        %v1563 = vpop.f32.mrb[0].mxu0
        %1564 = vmatprep.mubr.f32.mxu0 0.0
        %1565 = vmatmul.mubr.f32.gmra.mrb[0].mxu0 %v1416
        %v1566 = vpop.f32.mrb[0].mxu0
        %v1567 = vadd.f32 0.0, %v1566
        %v1568 = vpop.f32.mrb[0].mxu0
        %1569 = vmatprep.mubr.f32.mxu0 0.0
        %1570 = vmatmul.mubr.f32.gmra.mrb[0].mxu0 %v1417
        %v1571 = vpop.f32.mrb[0].mxu0
        %v1572 = vadd.f32 0.0, %v1571
        %v1573 = vpop.f32.mrb[0].mxu0
        %1574 = vmatprep.mubr.f32.mxu0 0.0
        %1575 = vmatmul.mubr.f32.gmra.mrb[0].mxu0 %v1418
        %v1576 = vpop.f32.mrb[0].mxu0
        %v1577 = vadd.f32 0.0, %v1576
        %v1578 = vpop.f32.mrb[0].mxu0
        %1579 = vmatprep.mubr.f32.mxu0 0.0
        %1580 = vmatmul.mubr.f32.gmra.mrb[0].mxu0 %v1419
        %v1581 = vpop.f32.mrb[0].mxu0
        %v1582 = vadd.f32 0.0, %v1581
        %v1583 = vpop.f32.mrb[0].mxu0
        %1584 = vmatprep.mubr.f32.mxu0 0.0
        %1585 = vmatmul.mubr.f32.gmra.mrb[0].mxu0 %v1420
        %v1586 = vpop.f32.mrb[0].mxu0
        %v1587 = vadd.f32 0.0, %v1586
        %v1588 = vpop.f32.mrb[0].mxu0
        %1589 = vmatprep.mubr.f32.mxu0 0.0
        %1590 = vmatmul.mubr.f32.gmra.mrb[0].mxu0 %v1421
        %v1591 = vpop.f32.mrb[0].mxu0
        %v1592 = vadd.f32 0.0, %v1591
        %v1593 = vpop.f32.mrb[0].mxu0
        %1594 = vmatprep.mubr.f32.mxu0 0.0
        %1595 = vmatmul.mubr.f32.gmra.mrb[0].mxu0 %v1422
        %v1596 = vpop.f32.mrb[0].mxu0
        %v1597 = vadd.f32 0.0, %v1596
        %v1598 = vpop.f32.mrb[0].mxu0
        %1599 = vmatprep.mubr.f32.mxu0 0.0
        %1600 = vmatmul.mubr.f32.gmra.mrb[0].mxu0 %v1439
        %v1601 = vpop.f32.mrb[0].mxu0
        %v1602 = vadd.f32 0.0, %v1601
        %v1603 = vpop.f32.mrb[0].mxu0
        %1604 = vmatprep.mubr.f32.mxu0 0.0
        %1605 = vmatmul.mubr.f32.gmra.mrb[0].mxu0 %v1440
        %v1606 = vpop.f32.mrb[0].mxu0
        %v1607 = vadd.f32 0.0, %v1606
        %v1608 = vpop.f32.mrb[0].mxu0
        %1609 = vmatprep.mubr.f32.mxu0 0.0
        %1610 = vmatmul.mubr.f32.gmra.mrb[0].mxu0 %v1441
        %v1611 = vpop.f32.mrb[0].mxu0
        %v1612 = vadd.f32 0.0, %v1611
        %v1613 = vpop.f32.mrb[0].mxu0
        %1614 = vmatprep.mubr.f32.mxu0 0.0
        %1615 = vmatmul.mubr.f32.gmra.mrb[0].mxu0 %v1442
        %v1616 = vpop.f32.mrb[0].mxu0
        %v1617 = vadd.f32 0.0, %v1616
        %v1618 = vpop.f32.mrb[0].mxu0
        %1619 = vdwg.mxu0
        %v1620 = vadd.f32 %v1371, %v1522
        %v1621 = vadd.f32 %v1372, %v1527
        %v1622 = vadd.f32 %v1373, %v1532
        %v1623 = vadd.f32 %v1374, %v1537
        %v1624 = vadd.f32 %v1375, %v1542
        %v1625 = vadd.f32 %v1376, %v1547
        %v1626 = vadd.f32 %v1377, %v1552
        %v1627 = vadd.f32 %v1378, %v1557
        %v1628 = vadd.f32 %v1379, %v1562
        %v1629 = vadd.f32 %v1380, %v1567
        %v1630 = vadd.f32 %v1381, %v1572
        %v1631 = vadd.f32 %v1382, %v1577
        %v1632 = vadd.f32 %v1383, %v1582
        %v1633 = vadd.f32 %v1384, %v1587
        %v1634 = vadd.f32 %v1385, %v1592
        %v1635 = vadd.f32 %v1386, %v1597
        %v1636 = vadd.f32 %v1387, %v1602
        %v1637 = vadd.f32 %v1388, %v1607
        %v1638 = vadd.f32 %v1389, %v1612
        %v1639 = vadd.f32 %v1390, %v1617
        %1640 = vst [vmem:[#allocation3] sm:$0xff] %v1620
        %1641 = vst [vmem:[#allocation3 + $0x8] sm:$0xff] %v1621
        %1642 = vst [vmem:[#allocation3 + $0x10] sm:$0xff] %v1622
        %1643 = vst [vmem:[#allocation3 + $0x18] sm:$0xff] %v1623
        %1644 = vst [vmem:[#allocation3 + $0x20] sm:$0xff] %v1624
        %1645 = vst [vmem:[#allocation3 + $0x28] sm:$0xff] %v1625
        %1646 = vst [vmem:[#allocation3 + $0x30] sm:$0xff] %v1626
        %1647 = vst [vmem:[#allocation3 + $0x38] sm:$0xff] %v1627
        %1648 = vst [vmem:[#allocation3 + $0x40] sm:$0xff] %v1628
        %1649 = vst [vmem:[#allocation3 + $0x48] sm:$0xff] %v1629
        %1650 = vst [vmem:[#allocation3 + $0x50] sm:$0xff] %v1630
        %1651 = vst [vmem:[#allocation3 + $0x58] sm:$0xff] %v1631
        %1652 = vst [vmem:[#allocation3 + $0x60] sm:$0xff] %v1632
        %1653 = vst [vmem:[#allocation3 + $0x68] sm:$0xff] %v1633
        %1654 = vst [vmem:[#allocation3 + $0x70] sm:$0xff] %v1634
        %1655 = vst [vmem:[#allocation3 + $0x78] sm:$0xff] %v1635
        %1656 = vst [vmem:[#allocation3 + $0x80] sm:$0xff] %v1636
        %1657 = vst [vmem:[#allocation3 + $0x88] sm:$0xff] %v1637
        %1658 = vst [vmem:[#allocation3 + $0x90] sm:$0xff] %v1638
        %1659 = vst [vmem:[#allocation3 + $0x98] sm:$0xff] %v1639
        %p1660 = scmp.eq.s32.totalorder %s31, 1
        %p1661 = scmp.eq.s32.totalorder %s32, 1
        %p1662 = pnand %p1660, %p1661
        %p1663 = pneg %p1662
        // Predicated region
        $region65: #{tpu_custom_call.1} parent=43 // pred_check
          _
        $region66: #{tpu_custom_call.1} parent=43 // pred_check_branch
          %1665 = sbr.rel (%p1662) target = $region68
        $region67: #{tpu_custom_call.1} parent=43 // pred_region
          %v1666 = vld [vmem:[#allocation10] sm:$0xff]
          %v1667 = vld [vmem:[#allocation10 + $0x8] sm:$0xff]
          %v1668 = vld [vmem:[#allocation10 + $0x10] sm:$0xff]
          %v1669 = vld [vmem:[#allocation10 + $0x18] sm:$0xff]
          %v1670 = vld [vmem:[#allocation10 + $0x20] sm:$0xff]
          %v1671 = vld [vmem:[#allocation10 + $0x28] sm:$0xff]
          %v1672 = vld [vmem:[#allocation10 + $0x30] sm:$0xff]
          %v1673 = vld [vmem:[#allocation10 + $0x38] sm:$0xff]
          %v1674 = vld [vmem:[#allocation10 + $0x40] sm:$0xff]
          %v1675 = vld [vmem:[#allocation10 + $0x48] sm:$0xff]
          %v1676 = vld [vmem:[#allocation10 + $0x50] sm:$0xff]
          %v1677 = vld [vmem:[#allocation10 + $0x58] sm:$0xff]
          %v1678 = vld [vmem:[#allocation10 + $0x60] sm:$0xff]
          %v1679 = vld [vmem:[#allocation10 + $0x68] sm:$0xff]
          %v1680 = vld [vmem:[#allocation10 + $0x70] sm:$0xff]
          %v1681 = vld [vmem:[#allocation10 + $0x78] sm:$0xff]
          %v1682 = vld [vmem:[#allocation10 + $0x80] sm:$0xff]
          %v1683 = vld [vmem:[#allocation10 + $0x88] sm:$0xff]
          %v1684 = vld [vmem:[#allocation10 + $0x90] sm:$0xff]
          %v1685 = vld [vmem:[#allocation10 + $0x98] sm:$0xff]
          %v1686 = vld [vmem:[#allocation3] sm:$0xff]
          %v1687 = vld [vmem:[#allocation3 + $0x8] sm:$0xff]
          %v1688 = vld [vmem:[#allocation3 + $0x10] sm:$0xff]
          %v1689 = vld [vmem:[#allocation3 + $0x18] sm:$0xff]
          %v1690 = vld [vmem:[#allocation3 + $0x20] sm:$0xff]
          %v1691 = vld [vmem:[#allocation3 + $0x28] sm:$0xff]
          %v1692 = vld [vmem:[#allocation3 + $0x30] sm:$0xff]
          %v1693 = vld [vmem:[#allocation3 + $0x38] sm:$0xff]
          %v1694 = vld [vmem:[#allocation3 + $0x40] sm:$0xff]
          %v1695 = vld [vmem:[#allocation3 + $0x48] sm:$0xff]
          %v1696 = vld [vmem:[#allocation3 + $0x50] sm:$0xff]
          %v1697 = vld [vmem:[#allocation3 + $0x58] sm:$0xff]
          %v1698 = vld [vmem:[#allocation3 + $0x60] sm:$0xff]
          %v1699 = vld [vmem:[#allocation3 + $0x68] sm:$0xff]
          %v1700 = vld [vmem:[#allocation3 + $0x70] sm:$0xff]
          %v1701 = vld [vmem:[#allocation3 + $0x78] sm:$0xff]
          %v1702 = vld [vmem:[#allocation3 + $0x80] sm:$0xff]
          %v1703 = vld [vmem:[#allocation3 + $0x88] sm:$0xff]
          %v1704 = vld [vmem:[#allocation3 + $0x90] sm:$0xff]
          %v1705 = vld [vmem:[#allocation3 + $0x98] sm:$0xff]
          %v1706 = vadd.f32 %v1666, %v1686
          %v1707 = vadd.f32 %v1667, %v1687
          %v1708 = vadd.f32 %v1668, %v1688
          %v1709 = vadd.f32 %v1669, %v1689
          %v1710 = vadd.f32 %v1670, %v1690
          %v1711 = vadd.f32 %v1671, %v1691
          %v1712 = vadd.f32 %v1672, %v1692
          %v1713 = vadd.f32 %v1673, %v1693
          %v1714 = vadd.f32 %v1674, %v1694
          %v1715 = vadd.f32 %v1675, %v1695
          %v1716 = vadd.f32 %v1676, %v1696
          %v1717 = vadd.f32 %v1677, %v1697
          %v1718 = vadd.f32 %v1678, %v1698
          %v1719 = vadd.f32 %v1679, %v1699
          %v1720 = vadd.f32 %v1680, %v1700
          %v1721 = vadd.f32 %v1681, %v1701
          %v1722 = vadd.f32 %v1682, %v1702
          %v1723 = vadd.f32 %v1683, %v1703
          %v1724 = vadd.f32 %v1684, %v1704
          %v1725 = vadd.f32 %v1685, %v1705
          %1726 = vst [vmem:[#allocation10] sm:$0xff] %v1706
          %1727 = vst [vmem:[#allocation10 + $0x8] sm:$0xff] %v1707
          %1728 = vst [vmem:[#allocation10 + $0x10] sm:$0xff] %v1708
          %1729 = vst [vmem:[#allocation10 + $0x18] sm:$0xff] %v1709
          %1730 = vst [vmem:[#allocation10 + $0x20] sm:$0xff] %v1710
          %1731 = vst [vmem:[#allocation10 + $0x28] sm:$0xff] %v1711
          %1732 = vst [vmem:[#allocation10 + $0x30] sm:$0xff] %v1712
          %1733 = vst [vmem:[#allocation10 + $0x38] sm:$0xff] %v1713
          %1734 = vst [vmem:[#allocation10 + $0x40] sm:$0xff] %v1714
          %1735 = vst [vmem:[#allocation10 + $0x48] sm:$0xff] %v1715
          %1736 = vst [vmem:[#allocation10 + $0x50] sm:$0xff] %v1716
          %1737 = vst [vmem:[#allocation10 + $0x58] sm:$0xff] %v1717
          %1738 = vst [vmem:[#allocation10 + $0x60] sm:$0xff] %v1718
          %1739 = vst [vmem:[#allocation10 + $0x68] sm:$0xff] %v1719
          %1740 = vst [vmem:[#allocation10 + $0x70] sm:$0xff] %v1720
          %1741 = vst [vmem:[#allocation10 + $0x78] sm:$0xff] %v1721
          %1742 = vst [vmem:[#allocation10 + $0x80] sm:$0xff] %v1722
          %1743 = vst [vmem:[#allocation10 + $0x88] sm:$0xff] %v1723
          %1744 = vst [vmem:[#allocation10 + $0x90] sm:$0xff] %v1724
          %1745 = vst [vmem:[#allocation10 + $0x98] sm:$0xff] %v1725
        $region68: #{tpu_custom_call.1} parent=43 // pred_fallthru
          _
        // Predicated region
        $region69: #{tpu_custom_call.1} parent=43 // pred_check
          %p1746 = pneg %p198
        $region70: #{tpu_custom_call.1} parent=43 // pred_check_branch
          %1748 = sbr.rel (%p1746) target = $region72
        $region71: #{tpu_custom_call.1} parent=43 // pred_region
          %s1750 = ssub.s32 2560, 2560
          %1751 = vsyncadd [#allocation7], %s1750
          %s1752 = sshll.u32 [#allocation10], 4
          %s1753 = int_to_ptr.vmem [resolvable:$true] %s1752
          %1758 = dma.vmem_to_hbm [thread:$0]  %s1753, 2560, %s6, [#allocation7], 128, 128, 8
        $region72: #{tpu_custom_call.1} parent=43 // pred_fallthru
          _
        // Predicated region
        $region73: #{tpu_custom_call.1} parent=43 // pred_check
          %p1759 = pneg %p219
        $region74: #{tpu_custom_call.1} parent=43 // pred_check_branch
          %1761 = sbr.rel (%p1759) target = $region76
        $region75: #{tpu_custom_call.1} parent=43 // pred_region
          %s1763 = ssub.s32 4096, 4096
          %1764 = vsyncadd [#allocation12], %s1763
          %s1765 = sshll.u32 [#allocation11], 4
          %s1766 = int_to_ptr.vmem [resolvable:$true] %s1765
          %1771 = dma.vmem_to_hbm [thread:$0]  %s1766, 4096, %s7, [#allocation12], 128, 128, 8
        $region76: #{tpu_custom_call.1} parent=43 // pred_fallthru
          _
        // Predicated region
        $region77: #{tpu_custom_call.1} parent=43 // pred_check
          %p1772 = pneg %p198
        $region78: #{tpu_custom_call.1} parent=43 // pred_check_branch
          %1774 = sbr.rel (%p1772) target = $region80
        $region79: #{tpu_custom_call.1} parent=43 // pred_region
          %1775 = dma.done [#allocation7], 2560
        $region80: #{tpu_custom_call.1} parent=43 // pred_fallthru
          _
        // Predicated region
        $region81: #{tpu_custom_call.1} parent=43 // pred_check
          %p1776 = pneg %p219
        $region82: #{tpu_custom_call.1} parent=43 // pred_check_branch
          %1778 = sbr.rel (%p1776) target = $region84
        $region83: #{tpu_custom_call.1} parent=43 // pred_region
          %1779 = dma.done [#allocation12], 4096
        $region84: #{tpu_custom_call.1} parent=43 // pred_fallthru
          _
      $region44: #{tpu_custom_call.1} parent=5 // pred_fallthru
        _
      %p1780 = scmp.le.s32.totalorder 2, %s22
      // Predicated region
      $region85: #{tpu_custom_call.1} parent=5 // pred_check
        %p1781 = pneg %p1780
      $region86: #{tpu_custom_call.1} parent=5 // pred_check_branch
        %1783 = sbr.rel (%p1781) target = $region88
      $region87: #{tpu_custom_call.1} parent=5 // pred_region
        %s1784 = ssub.s32 %s22, 2
      $region88: #{tpu_custom_call.1} parent=5 // pred_fallthru
        _
    $region6: #{tpu_custom_call.1} parent=1 // loop_footer
      %s26 = sadd.s32 1, %s22
    $region7: #{tpu_custom_call.1} parent=1 // loop_footer_branch
      %21 = sbr.rel target = $region3
    $region8: #{tpu_custom_call.1} parent=1 // loop_exit
      _
    %1785 = vsyncpa [#allocation6], 1
    %s1786 = scalar_lea.sflag [#allocation6], 1
    %1787 = vsyncpa %s1786, 1
    %1788 = vsyncpa [#allocation9], 1
    %s1789 = scalar_lea.sflag [#allocation9], 1
    %1790 = vsyncpa %s1789, 1
    %1791 = vsyncpa [#allocation7], 1
    %s1792 = scalar_lea.sflag [#allocation7], 1
    %1793 = vsyncpa %s1792, 1
    %1794 = vsyncpa [#allocation12], 1

</llo_original>
